<compile_context>
chip_gen: v5e
topology: v5e:2x2
jax: 0.10.0
libtpu: 0.0.40
codegen_flags: <defaults>
</compile_context>

<pallas_src>
import functools

import jax
import jax.numpy as jnp
from jax import lax
from jax.experimental import pallas as pl
from jax.experimental.pallas import tpu as pltpu

# ---- model config (from the PyTorch module) ----
N_EMBD = 384
NUM_HEADS = 4
HEAD_SIZE = 96            # head_size * num_heads == n_embd
# ---- small test shapes ----
B = 2
T = 16                    # T <= block_size (256); causal mask built in-kernel


def _mha_fused_kernel(x_ref, wqkv_ref, wproj_ref, bproj_ref, o_ref, *, num_heads):
    """Fused multi-head causal attention + output projection for one batch row.

    x_ref    : (1, T, C)      activations (bf16)
    wqkv_ref : (C, 3*H*Hs)    stacked [Wq heads | Wk heads | Wv heads] (bf16)
    wproj_ref: (H*Hs, C)      output projection weight (bf16)
    bproj_ref: (1, C)         output projection bias (fp32)
    o_ref    : (1, T, C)      final output (fp32), lane-dense (C = 384)
    """
    t = x_ref.shape[1]
    hh = wproj_ref.shape[0]              # H * Hs
    hs = hh // num_heads
    scale = hs ** -0.5

    x = x_ref[0]                                                        # (T, C)
    # Fused QKV projection: one wide MXU matmul, fp32 accumulation.
    qkv = jnp.dot(x, wqkv_ref[...],
                  preferred_element_type=jnp.float32)                  # (T, 3*H*Hs)

    # Causal mask (keep col <= row); diagonal always kept -> no all -inf rows.
    row = lax.broadcasted_iota(jnp.int32, (t, t), 0)
    col = lax.broadcasted_iota(jnp.int32, (t, t), 1)
    causal = row >= col

    heads = []
    for h in range(num_heads):                       # static unrolled loop (H=4)
        q = qkv[:, h * hs:(h + 1) * hs]                                 # (T, Hs)
        k = qkv[:, hh + h * hs: hh + (h + 1) * hs]
        v = qkv[:, 2 * hh + h * hs: 2 * hh + (h + 1) * hs]

        # q @ k^T without materializing the transpose (contract last dims).
        scores = lax.dot_general(
            q, k, (((1,), (1,)), ((), ())),
            preferred_element_type=jnp.float32) * scale                 # (T, T)
        scores = jnp.where(causal, scores, -jnp.inf)

        # Numerically-stable softmax; normalize the (T, Hs) output instead of
        # the (T, T) weights, using the (nearly free) EUP reciprocal.
        m = jnp.max(scores, axis=-1, keepdims=True)
        e = jnp.exp(scores - m)
        s = jnp.sum(e, axis=-1, keepdims=True)
        # TODO(synk): attention-weight dropout omitted (eval-mode identity).
        out_h = jnp.dot(e, v, preferred_element_type=jnp.float32)       # (T, Hs)
        heads.append(out_h * pl.reciprocal(s, approx=True))

    att = jnp.concatenate(heads, axis=-1)                               # (T, H*Hs)

    # Fused output projection + bias; single lane-dense (T, C) store.
    proj = jnp.dot(att.astype(wproj_ref.dtype), wproj_ref[...],
                   preferred_element_type=jnp.float32)
    # TODO(synk): final dropout omitted (eval-mode identity).
    o_ref[0] = (proj + bproj_ref[...]).astype(o_ref.dtype)


def multi_head_attention(x, wq, wk, wv, w_proj, b_proj,
                         *, compute_dtype=jnp.bfloat16):
    """x: (B, T, C); wq/wk/wv: (H, C, Hs); w_proj: (H*Hs, C); b_proj: (C,)."""
    Bq, Tq, C = x.shape
    H, _, Hs = wq.shape

    # Stack per-head weights into one wide QKV matrix: (C, 3*H*Hs),
    # column layout [q heads | k heads | v heads], head-major within each group.
    def _stack(w):                      # (H, C, Hs) -> (C, H*Hs)
        return jnp.transpose(w, (1, 0, 2)).reshape(C, H * Hs)

    w_qkv = jnp.concatenate([_stack(wq), _stack(wk), _stack(wv)], axis=-1)

    x_c = x.astype(compute_dtype)
    w_qkv_c = w_qkv.astype(compute_dtype)
    w_proj_c = w_proj.astype(compute_dtype)
    b_proj_c = b_proj.reshape(1, C).astype(jnp.float32)

    kernel = functools.partial(_mha_fused_kernel, num_heads=H)

    out = pl.pallas_call(
        kernel,
        out_shape=jax.ShapeDtypeStruct((Bq, Tq, C), jnp.float32),
        grid_spec=pltpu.PrefetchScalarGridSpec(
            num_scalar_prefetch=0,
            grid=(Bq,),
            in_specs=[
                pl.BlockSpec((1, Tq, C), lambda b: (b, 0, 0)),
                pl.BlockSpec((C, 3 * H * Hs), lambda b: (0, 0)),
                pl.BlockSpec((H * Hs, C), lambda b: (0, 0)),
                pl.BlockSpec((1, C), lambda b: (0, 0)),
            ],
            out_specs=pl.BlockSpec((1, Tq, C), lambda b: (b, 0, 0)),
        ),
        compiler_params=pltpu.CompilerParams(
            dimension_semantics=("parallel",)),
    )(x_c, w_qkv_c, w_proj_c, b_proj_c)
    return out


def _reference(x, wq, wk, wv, w_proj, b_proj):
    """Plain-JAX fp32 reference matching the PyTorch forward (eval mode)."""
    outs = []
    for h in range(NUM_HEADS):
        q = x @ wq[h]
        k = x @ wk[h]
        v = x @ wv[h]
        wei = (q @ jnp.swapaxes(k, -2, -1)) * (HEAD_SIZE ** -0.5)
        mask = jnp.tril(jnp.ones((T, T), dtype=bool))
        wei = jnp.where(mask, wei, -jnp.inf)
        wei = jax.nn.softmax(wei, axis=-1)
        outs.append(wei @ v)
    cat = jnp.concatenate(outs, axis=-1)
    return cat @ w_proj + b_proj


if __name__ == "__main__":
    key = jax.random.PRNGKey(0)
    kx, kq, kk, kv, kp, kb = jax.random.split(key, 6)

    x = jax.random.normal(kx, (B, T, N_EMBD), dtype=jnp.float32)
    wq = jax.random.normal(kq, (NUM_HEADS, N_EMBD, HEAD_SIZE), dtype=jnp.float32) * 0.02
    wk = jax.random.normal(kk, (NUM_HEADS, N_EMBD, HEAD_SIZE), dtype=jnp.float32) * 0.02
    wv = jax.random.normal(kv, (NUM_HEADS, N_EMBD, HEAD_SIZE), dtype=jnp.float32) * 0.02
    w_proj = jax.random.normal(kp, (NUM_HEADS * HEAD_SIZE, N_EMBD), dtype=jnp.float32) * 0.02
    b_proj = jax.random.normal(kb, (N_EMBD,), dtype=jnp.float32) * 0.02

    out = multi_head_attention(x, wq, wk, wv, w_proj, b_proj)
    out = jax.block_until_ready(out)

    ref = _reference(x, wq, wk, wv, w_proj, b_proj)
    assert out.shape == (B, T, N_EMBD)
    # Tolerance reflects bf16 inputs (fp32 accumulation) vs the fp32 reference.
    assert jnp.allclose(out, ref, rtol=2e-2, atol=2e-2), "mismatch vs reference"

    print("KERNEL_OK")
</pallas_src>

<mosaic_0001>
module attributes {stable_mosaic.version = 11 : i64} {
  func.func @_mha_fused_kernel(%arg0: i32, %arg1: memref<1x16x384xbf16, #tpu.memory_space<vmem>>, %arg2: memref<384x1152xbf16, #tpu.memory_space<vmem>>, %arg3: memref<384x384xbf16, #tpu.memory_space<vmem>>, %arg4: memref<1x384xf32, #tpu.memory_space<vmem>>, %arg5: memref<1x16x384xf32, #tpu.memory_space<vmem>>) attributes {dimension_semantics = [#tpu.dimension_semantics<parallel>], iteration_bounds = array<i64: 2>, scalar_prefetch = 0 : i64, scratch_operands = 0 : i64, tpu.core_type = #tpu.core_type<tc>, window_params = [{transform_indices = @transform_0, window_bounds = array<i64: 1, 16, 384>}, {pipeline_mode = #tpu.pipeline_mode<synchronous>, transform_indices = @transform_1, window_bounds = array<i64: 384, 1152>}, {pipeline_mode = #tpu.pipeline_mode<synchronous>, transform_indices = @transform_2, window_bounds = array<i64: 384, 384>}, {pipeline_mode = #tpu.pipeline_mode<synchronous>, transform_indices = @transform_3, window_bounds = array<i64: 1, 384>}, {transform_indices = @transform_4, window_bounds = array<i64: 1, 16, 384>}]} {
    %c0 = arith.constant 0 : index
    %c0_0 = arith.constant 0 : index
    %c0_1 = arith.constant 0 : index
    %0 = vector.load %arg1[%c0, %c0_0, %c0_1] : memref<1x16x384xbf16, #tpu.memory_space<vmem>>, vector<1x16x384xbf16>
    %1 = vector.shape_cast %0 : vector<1x16x384xbf16> to vector<16x384xbf16>
    %c0_2 = arith.constant 0 : index
    %c0_3 = arith.constant 0 : index
    %2 = vector.load %arg2[%c0_2, %c0_3] : memref<384x1152xbf16, #tpu.memory_space<vmem>>, vector<384x1152xbf16>
    %cst = arith.constant dense<0.000000e+00> : vector<16x1152xf32>
    %3 = tpu.matmul %1, %2, %cst {dimension_numbers = #tpu.dot_dimension_numbers<[1], [0], [0], [1], [0, 0, 1, 1], [], []>} : vector<16x384xbf16>, vector<384x1152xbf16>, vector<16x1152xf32> -> vector<16x1152xf32>
    %4 = tpu.iota {dimensions = array<i32: 0>} : vector<16x16xi32>
    %5 = tpu.iota {dimensions = array<i32: 1>} : vector<16x16xi32>
    %6 = arith.cmpi sge, %4, %5 : vector<16x16xi32>
    %7 = vector.extract_strided_slice %3 {offsets = [0, 0], sizes = [16, 96], strides = [1, 1]} : vector<16x1152xf32> to vector<16x96xf32>
    %8 = vector.extract_strided_slice %3 {offsets = [0, 384], sizes = [16, 96], strides = [1, 1]} : vector<16x1152xf32> to vector<16x96xf32>
    %9 = vector.extract_strided_slice %3 {offsets = [0, 768], sizes = [16, 96], strides = [1, 1]} : vector<16x1152xf32> to vector<16x96xf32>
    %cst_4 = arith.constant dense<0.000000e+00> : vector<16x16xf32>
    %10 = tpu.matmul %7, %8, %cst_4 {dimension_numbers = #tpu.dot_dimension_numbers<[1], [1], [0], [0], [0, 0, 1, 0], [], []>} : vector<16x96xf32>, vector<16x96xf32>, vector<16x16xf32> -> vector<16x16xf32>
    %cst_5 = arith.constant 0.102062076 : f32
    %11 = vector.broadcast %cst_5 : f32 to vector<16x16xf32>
    %12 = arith.mulf %10, %11 : vector<16x16xf32>
    %cst_6 = arith.constant 0xFF800000 : f32
    %13 = vector.broadcast %cst_6 : f32 to vector<16x16xf32>
    %14 = arith.select %6, %12, %13 : vector<16x16xi1>, vector<16x16xf32>
    %cst_7 = arith.constant dense<0xFF800000> : vector<16xf32>
    %15 = vector.multi_reduction <maximumf>, %14, %cst_7 [1] : vector<16x16xf32> to vector<16xf32>
    %16 = vector.shape_cast %15 : vector<16xf32> to vector<16x1xf32>
    %17 = vector.broadcast %16 : vector<16x1xf32> to vector<16x16xf32>
    %18 = arith.subf %14, %17 : vector<16x16xf32>
    %19 = math.exp %18 : vector<16x16xf32>
    %cst_8 = arith.constant dense<0.000000e+00> : vector<16xf32>
    %20 = vector.multi_reduction <add>, %19, %cst_8 [1] : vector<16x16xf32> to vector<16xf32>
    %21 = vector.shape_cast %20 : vector<16xf32> to vector<16x1xf32>
    %cst_9 = arith.constant dense<0.000000e+00> : vector<16x96xf32>
    %22 = tpu.matmul %19, %9, %cst_9 {dimension_numbers = #tpu.dot_dimension_numbers<[1], [0], [0], [1], [0, 0, 1, 1], [], []>} : vector<16x16xf32>, vector<16x96xf32>, vector<16x96xf32> -> vector<16x96xf32>
    %23 = tpu.reciprocal %21 {approx = true} : vector<16x1xf32> -> vector<16x1xf32>
    %24 = vector.broadcast %23 : vector<16x1xf32> to vector<16x96xf32>
    %25 = arith.mulf %22, %24 : vector<16x96xf32>
    %26 = vector.extract_strided_slice %3 {offsets = [0, 96], sizes = [16, 96], strides = [1, 1]} : vector<16x1152xf32> to vector<16x96xf32>
    %27 = vector.extract_strided_slice %3 {offsets = [0, 480], sizes = [16, 96], strides = [1, 1]} : vector<16x1152xf32> to vector<16x96xf32>
    %28 = vector.extract_strided_slice %3 {offsets = [0, 864], sizes = [16, 96], strides = [1, 1]} : vector<16x1152xf32> to vector<16x96xf32>
    %cst_10 = arith.constant dense<0.000000e+00> : vector<16x16xf32>
    %29 = tpu.matmul %26, %27, %cst_10 {dimension_numbers = #tpu.dot_dimension_numbers<[1], [1], [0], [0], [0, 0, 1, 0], [], []>} : vector<16x96xf32>, vector<16x96xf32>, vector<16x16xf32> -> vector<16x16xf32>
    %cst_11 = arith.constant 0.102062076 : f32
    %30 = vector.broadcast %cst_11 : f32 to vector<16x16xf32>
    %31 = arith.mulf %29, %30 : vector<16x16xf32>
    %cst_12 = arith.constant 0xFF800000 : f32
    %32 = vector.broadcast %cst_12 : f32 to vector<16x16xf32>
    %33 = arith.select %6, %31, %32 : vector<16x16xi1>, vector<16x16xf32>
    %cst_13 = arith.constant dense<0xFF800000> : vector<16xf32>
    %34 = vector.multi_reduction <maximumf>, %33, %cst_13 [1] : vector<16x16xf32> to vector<16xf32>
    %35 = vector.shape_cast %34 : vector<16xf32> to vector<16x1xf32>
    %36 = vector.broadcast %35 : vector<16x1xf32> to vector<16x16xf32>
    %37 = arith.subf %33, %36 : vector<16x16xf32>
    %38 = math.exp %37 : vector<16x16xf32>
    %cst_14 = arith.constant dense<0.000000e+00> : vector<16xf32>
    %39 = vector.multi_reduction <add>, %38, %cst_14 [1] : vector<16x16xf32> to vector<16xf32>
    %40 = vector.shape_cast %39 : vector<16xf32> to vector<16x1xf32>
    %cst_15 = arith.constant dense<0.000000e+00> : vector<16x96xf32>
    %41 = tpu.matmul %38, %28, %cst_15 {dimension_numbers = #tpu.dot_dimension_numbers<[1], [0], [0], [1], [0, 0, 1, 1], [], []>} : vector<16x16xf32>, vector<16x96xf32>, vector<16x96xf32> -> vector<16x96xf32>
    %42 = tpu.reciprocal %40 {approx = true} : vector<16x1xf32> -> vector<16x1xf32>
    %43 = vector.broadcast %42 : vector<16x1xf32> to vector<16x96xf32>
    %44 = arith.mulf %41, %43 : vector<16x96xf32>
    %45 = vector.extract_strided_slice %3 {offsets = [0, 192], sizes = [16, 96], strides = [1, 1]} : vector<16x1152xf32> to vector<16x96xf32>
    %46 = vector.extract_strided_slice %3 {offsets = [0, 576], sizes = [16, 96], strides = [1, 1]} : vector<16x1152xf32> to vector<16x96xf32>
    %47 = vector.extract_strided_slice %3 {offsets = [0, 960], sizes = [16, 96], strides = [1, 1]} : vector<16x1152xf32> to vector<16x96xf32>
    %cst_16 = arith.constant dense<0.000000e+00> : vector<16x16xf32>
    %48 = tpu.matmul %45, %46, %cst_16 {dimension_numbers = #tpu.dot_dimension_numbers<[1], [1], [0], [0], [0, 0, 1, 0], [], []>} : vector<16x96xf32>, vector<16x96xf32>, vector<16x16xf32> -> vector<16x16xf32>
    %cst_17 = arith.constant 0.102062076 : f32
    %49 = vector.broadcast %cst_17 : f32 to vector<16x16xf32>
    %50 = arith.mulf %48, %49 : vector<16x16xf32>
    %cst_18 = arith.constant 0xFF800000 : f32
    %51 = vector.broadcast %cst_18 : f32 to vector<16x16xf32>
    %52 = arith.select %6, %50, %51 : vector<16x16xi1>, vector<16x16xf32>
    %cst_19 = arith.constant dense<0xFF800000> : vector<16xf32>
    %53 = vector.multi_reduction <maximumf>, %52, %cst_19 [1] : vector<16x16xf32> to vector<16xf32>
    %54 = vector.shape_cast %53 : vector<16xf32> to vector<16x1xf32>
    %55 = vector.broadcast %54 : vector<16x1xf32> to vector<16x16xf32>
    %56 = arith.subf %52, %55 : vector<16x16xf32>
    %57 = math.exp %56 : vector<16x16xf32>
    %cst_20 = arith.constant dense<0.000000e+00> : vector<16xf32>
    %58 = vector.multi_reduction <add>, %57, %cst_20 [1] : vector<16x16xf32> to vector<16xf32>
    %59 = vector.shape_cast %58 : vector<16xf32> to vector<16x1xf32>
    %cst_21 = arith.constant dense<0.000000e+00> : vector<16x96xf32>
    %60 = tpu.matmul %57, %47, %cst_21 {dimension_numbers = #tpu.dot_dimension_numbers<[1], [0], [0], [1], [0, 0, 1, 1], [], []>} : vector<16x16xf32>, vector<16x96xf32>, vector<16x96xf32> -> vector<16x96xf32>
    %61 = tpu.reciprocal %59 {approx = true} : vector<16x1xf32> -> vector<16x1xf32>
    %62 = vector.broadcast %61 : vector<16x1xf32> to vector<16x96xf32>
    %63 = arith.mulf %60, %62 : vector<16x96xf32>
    %64 = vector.extract_strided_slice %3 {offsets = [0, 288], sizes = [16, 96], strides = [1, 1]} : vector<16x1152xf32> to vector<16x96xf32>
    %65 = vector.extract_strided_slice %3 {offsets = [0, 672], sizes = [16, 96], strides = [1, 1]} : vector<16x1152xf32> to vector<16x96xf32>
    %66 = vector.extract_strided_slice %3 {offsets = [0, 1056], sizes = [16, 96], strides = [1, 1]} : vector<16x1152xf32> to vector<16x96xf32>
    %cst_22 = arith.constant dense<0.000000e+00> : vector<16x16xf32>
    %67 = tpu.matmul %64, %65, %cst_22 {dimension_numbers = #tpu.dot_dimension_numbers<[1], [1], [0], [0], [0, 0, 1, 0], [], []>} : vector<16x96xf32>, vector<16x96xf32>, vector<16x16xf32> -> vector<16x16xf32>
    %cst_23 = arith.constant 0.102062076 : f32
    %68 = vector.broadcast %cst_23 : f32 to vector<16x16xf32>
    %69 = arith.mulf %67, %68 : vector<16x16xf32>
    %cst_24 = arith.constant 0xFF800000 : f32
    %70 = vector.broadcast %cst_24 : f32 to vector<16x16xf32>
    %71 = arith.select %6, %69, %70 : vector<16x16xi1>, vector<16x16xf32>
    %cst_25 = arith.constant dense<0xFF800000> : vector<16xf32>
    %72 = vector.multi_reduction <maximumf>, %71, %cst_25 [1] : vector<16x16xf32> to vector<16xf32>
    %73 = vector.shape_cast %72 : vector<16xf32> to vector<16x1xf32>
    %74 = vector.broadcast %73 : vector<16x1xf32> to vector<16x16xf32>
    %75 = arith.subf %71, %74 : vector<16x16xf32>
    %76 = math.exp %75 : vector<16x16xf32>
    %cst_26 = arith.constant dense<0.000000e+00> : vector<16xf32>
    %77 = vector.multi_reduction <add>, %76, %cst_26 [1] : vector<16x16xf32> to vector<16xf32>
    %78 = vector.shape_cast %77 : vector<16xf32> to vector<16x1xf32>
    %cst_27 = arith.constant dense<0.000000e+00> : vector<16x96xf32>
    %79 = tpu.matmul %76, %66, %cst_27 {dimension_numbers = #tpu.dot_dimension_numbers<[1], [0], [0], [1], [0, 0, 1, 1], [], []>} : vector<16x16xf32>, vector<16x96xf32>, vector<16x96xf32> -> vector<16x96xf32>
    %80 = tpu.reciprocal %78 {approx = true} : vector<16x1xf32> -> vector<16x1xf32>
    %81 = vector.broadcast %80 : vector<16x1xf32> to vector<16x96xf32>
    %82 = arith.mulf %79, %81 : vector<16x96xf32>
    %83 = tpu.concatenate %25, %44, %63, %82 in 1 : vector<16x96xf32>, vector<16x96xf32>, vector<16x96xf32>, vector<16x96xf32> -> vector<16x384xf32>
    %84 = arith.truncf %83 : vector<16x384xf32> to vector<16x384xbf16>
    %c0_28 = arith.constant 0 : index
    %c0_29 = arith.constant 0 : index
    %85 = vector.load %arg3[%c0_28, %c0_29] : memref<384x384xbf16, #tpu.memory_space<vmem>>, vector<384x384xbf16>
    %cst_30 = arith.constant dense<0.000000e+00> : vector<16x384xf32>
    %86 = tpu.matmul %84, %85, %cst_30 {dimension_numbers = #tpu.dot_dimension_numbers<[1], [0], [0], [1], [0, 0, 1, 1], [], []>} : vector<16x384xbf16>, vector<384x384xbf16>, vector<16x384xf32> -> vector<16x384xf32>
    %c0_31 = arith.constant 0 : index
    %c0_32 = arith.constant 0 : index
    %87 = vector.load %arg4[%c0_31, %c0_32] : memref<1x384xf32, #tpu.memory_space<vmem>>, vector<1x384xf32>
    %88 = vector.broadcast %87 : vector<1x384xf32> to vector<16x384xf32>
    %89 = arith.addf %86, %88 : vector<16x384xf32>
    %c0_33 = arith.constant 0 : index
    %c0_34 = arith.constant 0 : index
    %c0_35 = arith.constant 0 : index
    %90 = vector.load %arg5[%c0_33, %c0_34, %c0_35] : memref<1x16x384xf32, #tpu.memory_space<vmem>>, vector<1x16x384xf32>
    %91 = vector.shape_cast %90 : vector<1x16x384xf32> to vector<16x384xf32>
    %92 = vector.shape_cast %89 : vector<16x384xf32> to vector<1x16x384xf32>
    tpu.vector_store %arg5[%c0_33, %c0_34, %c0_35], %92 {strides = array<i32>} : memref<1x16x384xf32, #tpu.memory_space<vmem>>, vector<1x16x384xf32>,
    return
  }
  func.func @transform_0(%arg0: i32) -> (i32, i32, i32) {
    %c0_i32 = arith.constant 0 : i32
    %c0_i32_0 = arith.constant 0 : i32
    %c0_i32_1 = arith.constant 0 : i32
    return %arg0, %c0_i32, %c0_i32_0 : i32, i32, i32
  }
  func.func @transform_1(%arg0: i32) -> (i32, i32) {
    %c0_i32 = arith.constant 0 : i32
    %c0_i32_0 = arith.constant 0 : i32
    %c0_i32_1 = arith.constant 0 : i32
    return %c0_i32, %c0_i32_0 : i32, i32
  }
  func.func @transform_2(%arg0: i32) -> (i32, i32) {
    %c0_i32 = arith.constant 0 : i32
    %c0_i32_0 = arith.constant 0 : i32
    %c0_i32_1 = arith.constant 0 : i32
    return %c0_i32, %c0_i32_0 : i32, i32
  }
  func.func @transform_3(%arg0: i32) -> (i32, i32) {
    %c0_i32 = arith.constant 0 : i32
    %c0_i32_0 = arith.constant 0 : i32
    %c0_i32_1 = arith.constant 0 : i32
    return %c0_i32, %c0_i32_0 : i32, i32
  }
  func.func @transform_4(%arg0: i32) -> (i32, i32, i32) {
    %c0_i32 = arith.constant 0 : i32
    %c0_i32_0 = arith.constant 0 : i32
    %c0_i32_1 = arith.constant 0 : i32
    return %arg0, %c0_i32, %c0_i32_0 : i32, i32, i32
  }
}

</mosaic_0001>

<llo_original>
// kernel: tpu_custom_call.1
$region0: #{tpu_custom_call.1}
  #allocation0 [shape = 'u32[]', space=smem, size = 0x4, offset = 0x4, fixed_abs, tag = 'smem constant byte address 0x4 - core index']
  #allocation1 [shape = 'u32[72,128]{1,0:T(1,128)}', space=vmem, size = 0x9000, scoped, tag = 'internal scratch']
  %s0 = inlined_call_operand.hbm [shape: bf16[2,16,384], index: 0, kind: input, shape index: {}]
  %s1 = inlined_call_operand.hbm [shape: bf16[384,1152], index: 1, kind: input, shape index: {}]
  %s2 = inlined_call_operand.hbm [shape: bf16[384,384], index: 2, kind: input, shape index: {}]
  %s3 = inlined_call_operand.hbm [shape: f32[1,384], index: 3, kind: input, shape index: {}]
  %s4 = inlined_call_operand.hbm [shape: f32[2,16,384], index: 4, kind: output, shape index: {}]
  %s5 = sld [smem:[#allocation0]]
  $region65: #{tpu_custom_call.1} parent=0
    _
  %s7 = ssub.s32 1, %s5
  %s8 = scalar_select 0, %s7, %s5
  $region1: #{tpu_custom_call.1} parent=0
    #allocation2 [shape = 'u8[24576]{0}', space=vmem, size = 0x6000, scoped, tag = 'input window, operand 0']
    #allocation3 [shape = 's32[2]{0}', space=sflag, size = 0x8, scoped, tag = 'scoped memory for tpu_custom_call.1']
    #allocation4 [shape = 's32[2]{0}', space=sflag, size = 0x8, scoped, tag = 'scoped memory for tpu_custom_call.1']
    #allocation5 [shape = 'u8[884736]{0}', space=vmem, size = 0xd8000, scoped, tag = 'input window, operand 1, single buffered']
    #allocation6 [shape = 's32[1]{0}', space=sflag, size = 0x4, scoped, tag = 'scoped memory for tpu_custom_call.1']
    #allocation7 [shape = 'u8[294912]{0}', space=vmem, size = 0x48000, scoped, tag = 'input window, operand 2, single buffered']
    #allocation8 [shape = 'u8[1536]{0}', space=vmem, size = 0x800, scoped, tag = 'input window, operand 3, single buffered']
    #allocation9 [shape = 's32[1]{0}', space=sflag, size = 0x4, scoped, tag = 'scoped memory for tpu_custom_call.1']
    #allocation10 [shape = 'u8[49152]{0}', space=vmem, size = 0xc000, scoped, tag = 'output window, operand 0']
    %9 = vsyncpa [#allocation3], 0
    %s10 = scalar_lea.sflag [#allocation3], 1
    %11 = vsyncpa %s10, 0
    %12 = vsyncpa [#allocation6], 0
    %13 = vsyncpa [#allocation9], 0
    %14 = vsyncpa [#allocation4], 0
    %s15 = scalar_lea.sflag [#allocation4], 1
    %16 = vsyncpa %s15, 0
    loop: start=0, step=1, limit=4
    $region2: #{tpu_custom_call.1} parent=1 // loop_pre_header
      _
    $region3: #{tpu_custom_call.1} parent=1 // loop_header
      %s18 = sphi 0, %s22
      %p19 = scmp.ge.s32.totalorder %s18, 4
      %s28 = sphi 0, %s30
      %s31 = sphi 0, %s28
      %s32 = sphi 0, %s31
      %s48 = sphi 0, %s32
      %s52 = sphi 0, %s52
      %s54 = sphi 0, %s52
      %s55 = sphi 0, %s54
      %s69 = sphi 0, %s55
      %s73 = sphi 0, %s73
      %s75 = sphi 0, %s73
      %s76 = sphi 0, %s75
      %s90 = sphi 0, %s76
      %s94 = sphi 0, %s94
      %s96 = sphi 0, %s94
      %s97 = sphi 0, %s96
      %s111 = sphi 0, %s97
      %s117 = sphi 0, %s119
      %s120 = sphi 0, %s117
      %s121 = sphi 0, %s120
      %s137 = sphi 0, %s121
    $region4: #{tpu_custom_call.1} parent=1 // loop_header_branch
      %21 = sbr.rel (%p19) target = $region8
    $region5: #{tpu_custom_call.1} parent=1 // loop_body
      %s23 = ssub.s32 %s18, 1
      %s24 = ssub.s32 %s18, 2
      %s25 = sadd.s32 %s18, 1
      %s26 = ssub.s32 %s18, %s25
      %p27 = scmp.eq.s32.totalorder %s26, 0
      %s29 = sadd.s32 %s28, 1
      %s30 = scalar_select %p27, %s28, %s29
      %p33 = pneg %p27
      %p34 = scmp.eq.s32.totalorder %s18, 1
      %p35 = por %p33, %p34
      %p36 = scmp.ne.s32.totalorder %s28, %s31
      %p37 = scmp.eq.s32.totalorder %s18, 0
      %p38 = por %p36, %p37
      %p39 = scmp.ne.s32.totalorder %s28, %s31
      %p40 = scmp.eq.s32.totalorder %s23, 1
      %p41 = por %p39, %p40
      %p42 = scmp.ne.s32.totalorder %s31, %s32
      %p43 = scmp.eq.s32.totalorder %s23, 0
      %p44 = por %p42, %p43
      %p45 = scmp.ne.s32.totalorder %s31, %s32
      %p46 = scmp.eq.s32.totalorder %s24, 1
      %p47 = por %p45, %p46
      %p49 = scmp.ne.s32.totalorder %s32, %s48
      %p50 = scmp.eq.s32.totalorder %s24, 0
      %p51 = por %p49, %p50
      %s53 = sadd.s32 %s52, 1
      %p56 = scmp.eq.s32.totalorder %s18, 1
      %p57 = scmp.ne.s32.totalorder %s52, %s54
      %p58 = scmp.eq.s32.totalorder %s18, 0
      %p59 = por %p57, %p58
      %p60 = scmp.ne.s32.totalorder %s52, %s54
      %p61 = scmp.eq.s32.totalorder %s23, 1
      %p62 = por %p60, %p61
      %p63 = scmp.ne.s32.totalorder %s54, %s55
      %p64 = scmp.eq.s32.totalorder %s23, 0
      %p65 = por %p63, %p64
      %p66 = scmp.ne.s32.totalorder %s54, %s55
      %p67 = scmp.eq.s32.totalorder %s24, 1
      %p68 = por %p66, %p67
      %p70 = scmp.ne.s32.totalorder %s55, %s69
      %p71 = scmp.eq.s32.totalorder %s24, 0
      %p72 = por %p70, %p71
      %s74 = sadd.s32 %s73, 1
      %p77 = scmp.eq.s32.totalorder %s18, 1
      %p78 = scmp.ne.s32.totalorder %s73, %s75
      %p79 = scmp.eq.s32.totalorder %s18, 0
      %p80 = por %p78, %p79
      %p81 = scmp.ne.s32.totalorder %s73, %s75
      %p82 = scmp.eq.s32.totalorder %s23, 1
      %p83 = por %p81, %p82
      %p84 = scmp.ne.s32.totalorder %s75, %s76
      %p85 = scmp.eq.s32.totalorder %s23, 0
      %p86 = por %p84, %p85
      %p87 = scmp.ne.s32.totalorder %s75, %s76
      %p88 = scmp.eq.s32.totalorder %s24, 1
      %p89 = por %p87, %p88
      %p91 = scmp.ne.s32.totalorder %s76, %s90
      %p92 = scmp.eq.s32.totalorder %s24, 0
      %p93 = por %p91, %p92
      %s95 = sadd.s32 %s94, 1
      %p98 = scmp.eq.s32.totalorder %s18, 1
      %p99 = scmp.ne.s32.totalorder %s94, %s96
      %p100 = scmp.eq.s32.totalorder %s18, 0
      %p101 = por %p99, %p100
      %p102 = scmp.ne.s32.totalorder %s94, %s96
      %p103 = scmp.eq.s32.totalorder %s23, 1
      %p104 = por %p102, %p103
      %p105 = scmp.ne.s32.totalorder %s96, %s97
      %p106 = scmp.eq.s32.totalorder %s23, 0
      %p107 = por %p105, %p106
      %p108 = scmp.ne.s32.totalorder %s96, %s97
      %p109 = scmp.eq.s32.totalorder %s24, 1
      %p110 = por %p108, %p109
      %p112 = scmp.ne.s32.totalorder %s97, %s111
      %p113 = scmp.eq.s32.totalorder %s24, 0
      %p114 = por %p112, %p113
      %s115 = ssub.s32 %s18, %s25
      %p116 = scmp.eq.s32.totalorder %s115, 0
      %s118 = sadd.s32 %s117, 1
      %s119 = scalar_select %p116, %s117, %s118
      %p122 = pneg %p116
      %p123 = scmp.eq.s32.totalorder %s18, 1
      %p124 = por %p122, %p123
      %p125 = scmp.ne.s32.totalorder %s117, %s120
      %p126 = scmp.eq.s32.totalorder %s18, 0
      %p127 = por %p125, %p126
      %p128 = scmp.ne.s32.totalorder %s117, %s120
      %p129 = scmp.eq.s32.totalorder %s23, 1
      %p130 = por %p128, %p129
      %p131 = scmp.ne.s32.totalorder %s120, %s121
      %p132 = scmp.eq.s32.totalorder %s23, 0
      %p133 = por %p131, %p132
      %p134 = scmp.ne.s32.totalorder %s120, %s121
      %p135 = scmp.eq.s32.totalorder %s24, 1
      %p136 = por %p134, %p135
      %p138 = scmp.ne.s32.totalorder %s121, %s137
      %p139 = scmp.eq.s32.totalorder %s24, 0
      %p140 = por %p138, %p139
      %p141 = scmp.le.s32.totalorder 1, %s18
      %p142 = scmp.lt.s32.totalorder %s18, 3
      %p143 = pnand %p141, %p142
      %p144 = pneg %p143
      // Predicated region
      $region9: #{tpu_custom_call.1} parent=5 // pred_check
        _
      $region10: #{tpu_custom_call.1} parent=5 // pred_check_branch
        %146 = sbr.rel (%p143) target = $region12
      $region11: #{tpu_custom_call.1} parent=5 // pred_region
        %s147 = ssub.s32 %s18, 1
        // Predicated region
        $region13: #{tpu_custom_call.1} parent=11 // pred_check
          %p148 = pneg %p65
        $region14: #{tpu_custom_call.1} parent=11 // pred_check_branch
          %150 = sbr.rel (%p148) target = $region16
        $region15: #{tpu_custom_call.1} parent=11 // pred_region
          %152 = vsyncadd [#allocation6], 0
          %s153 = sshll.u32 %s1, 4
          %s154 = int_to_ptr.hbm [resolvable:$true] %s153
          %s155 = sshll.u32 [#allocation5], 4
          %s156 = int_to_ptr.vmem [resolvable:$true] %s155
          %161 = dma.hbm_to_vmem [thread:$0]  %s154, 27648, %s156, [#allocation6], 576, 576, 36
        $region16: #{tpu_custom_call.1} parent=11 // pred_fallthru
          _
        // Predicated region
        $region17: #{tpu_custom_call.1} parent=11 // pred_check
          %p162 = pneg %p86
        $region18: #{tpu_custom_call.1} parent=11 // pred_check_branch
          %164 = sbr.rel (%p162) target = $region20
        $region19: #{tpu_custom_call.1} parent=11 // pred_region
          %166 = vsyncadd [#allocation6], 0
          %s167 = sshll.u32 %s2, 4
          %s168 = int_to_ptr.hbm [resolvable:$true] %s167
          %s169 = sshll.u32 [#allocation7], 4
          %s170 = int_to_ptr.vmem [resolvable:$true] %s169
          %175 = dma.hbm_to_vmem [thread:$0]  %s168, 9216, %s170, [#allocation6], 192, 192, 12
        $region20: #{tpu_custom_call.1} parent=11 // pred_fallthru
          _
        // Predicated region
        $region21: #{tpu_custom_call.1} parent=11 // pred_check
          %p176 = pneg %p107
        $region22: #{tpu_custom_call.1} parent=11 // pred_check_branch
          %178 = sbr.rel (%p176) target = $region24
        $region23: #{tpu_custom_call.1} parent=11 // pred_region
          %180 = vsyncadd [#allocation9], 0
          %s182 = sshll.u32 %s3, 4
          %s183 = int_to_ptr.hbm [resolvable:$true] %s182
          %s184 = sshll.u32 [#allocation8], 4
          %s185 = int_to_ptr.vmem [resolvable:$true] %s184
          %187 = dma.hbm_to_vmem [thread:$0]  %s183, 48, %s185, [#allocation9]
        $region24: #{tpu_custom_call.1} parent=11 // pred_fallthru
          _
      $region12: #{tpu_custom_call.1} parent=5 // pred_fallthru
        _
      %p188 = scmp.lt.s32.totalorder %s18, 2
      // Predicated region
      $region25: #{tpu_custom_call.1} parent=5 // pred_check
        %p189 = pneg %p188
      $region26: #{tpu_custom_call.1} parent=5 // pred_check_branch
        %191 = sbr.rel (%p189) target = $region28
      $region27: #{tpu_custom_call.1} parent=5 // pred_region
        // Predicated region
        $region29: #{tpu_custom_call.1} parent=27 // pred_check
          %p192 = pneg %p38
        $region30: #{tpu_custom_call.1} parent=27 // pred_check_branch
          %194 = sbr.rel (%p192) target = $region32
        $region31: #{tpu_custom_call.1} parent=27 // pred_region
          %s195 = sand.u32 %s28, 1
          %s196 = scalar_lea.sflag [#allocation3], %s195
          %s197 = sand.u32 %s28, 1
          %s198 = smul.addr %s197, 24
          %s199 = scalar_lea.vmem [#allocation2], %s198
          %201 = vsyncadd %s196, 0
          %s202 = smul.addr %s18, 6
          %s203 = smul.addr %s202, 4
          %s204 = scalar_lea.hbm %s0, %s203
          %s205 = sshll.u32 %s204, 4
          %s206 = int_to_ptr.hbm [resolvable:$true] %s205
          %s207 = sshll.u32 %s199, 4
          %s208 = int_to_ptr.vmem [resolvable:$true] %s207
          %213 = dma.hbm_to_vmem [thread:$0]  %s206, 384, %s208, %s196, 192, 192, 12
        $region32: #{tpu_custom_call.1} parent=27 // pred_fallthru
          _
      $region28: #{tpu_custom_call.1} parent=5 // pred_fallthru
        _
      %p214 = scmp.le.s32.totalorder 1, %s18
      %p215 = scmp.lt.s32.totalorder %s18, 3
      %p216 = pnand %p214, %p215
      %p217 = pneg %p216
      // Predicated region
      $region33: #{tpu_custom_call.1} parent=5 // pred_check
        _
      $region34: #{tpu_custom_call.1} parent=5 // pred_check_branch
        %219 = sbr.rel (%p216) target = $region36
      $region35: #{tpu_custom_call.1} parent=5 // pred_region
        %s220 = ssub.s32 %s18, 1
        %s221 = sand.u32 %s31, 1
        %s222 = scalar_lea.sflag [#allocation3], %s221
        %s223 = sand.u32 %s31, 1
        %s224 = smul.addr %s223, 24
        %s225 = scalar_lea.vmem [#allocation2], %s224
        // Predicated region
        $region37: #{tpu_custom_call.1} parent=35 // pred_check
          %p226 = pneg %p44
        $region38: #{tpu_custom_call.1} parent=35 // pred_check_branch
          %228 = sbr.rel (%p226) target = $region40
        $region39: #{tpu_custom_call.1} parent=35 // pred_region
          %230 = dma.done %s222, 384
        $region40: #{tpu_custom_call.1} parent=35 // pred_fallthru
          _
        // Predicated region
        $region41: #{tpu_custom_call.1} parent=35 // pred_check
          %p231 = pneg %p65
        $region42: #{tpu_custom_call.1} parent=35 // pred_check_branch
          %233 = sbr.rel (%p231) target = $region44
        $region43: #{tpu_custom_call.1} parent=35 // pred_region
          %235 = dma.done [#allocation6], 27648
        $region44: #{tpu_custom_call.1} parent=35 // pred_fallthru
          _
        // Predicated region
        $region45: #{tpu_custom_call.1} parent=35 // pred_check
          %p236 = pneg %p86
        $region46: #{tpu_custom_call.1} parent=35 // pred_check_branch
          %238 = sbr.rel (%p236) target = $region48
        $region47: #{tpu_custom_call.1} parent=35 // pred_region
          %240 = dma.done [#allocation6], 9216
        $region48: #{tpu_custom_call.1} parent=35 // pred_fallthru
          _
        // Predicated region
        $region49: #{tpu_custom_call.1} parent=35 // pred_check
          %p241 = pneg %p107
        $region50: #{tpu_custom_call.1} parent=35 // pred_check_branch
          %243 = sbr.rel (%p241) target = $region52
        $region51: #{tpu_custom_call.1} parent=35 // pred_region
          %245 = dma.done [#allocation9], 48
        $region52: #{tpu_custom_call.1} parent=35 // pred_fallthru
          _
        %s246 = sand.u32 %s31, 1
        %s247 = scalar_lea.sflag [#allocation3], %s246
        %s248 = sand.u32 %s31, 1
        %s249 = smul.addr %s248, 24
        %s250 = scalar_lea.vmem [#allocation2], %s249
        %p251 = pneg %p44
        %p252 = pneg %p41
        %p253 = pneg %p65
        %p254 = pneg %p62
        %p255 = pneg %p86
        %p256 = pneg %p83
        %p257 = pneg %p107
        %p258 = pneg %p104
        %p259 = pneg %p133
        %p260 = pneg %p130
        %s261 = sand.u32 %s120, 1
        %s262 = scalar_lea.sflag [#allocation4], %s261
        %s263 = sand.u32 %s120, 1
        %s264 = smul.addr %s263, 48
        %s265 = scalar_lea.vmem [#allocation10], %s264
        %v266 = vld [vmem:[%s225] sm:$0xff]
        %v267 = vld [vmem:[%s225 + $0x8] sm:$0xf]
        %v268 = vld [vmem:[%s225 + $0xc] sm:$0xff]
        %v269 = vld [vmem:[%s225 + $0x14] sm:$0xf]
        %v270 = vld [vmem:[#allocation5] sm:$0xff]
        %v271 = vld [vmem:[#allocation5 + $0x8] sm:$0xff]
        %v272 = vld [vmem:[#allocation5 + $0x10] sm:$0xff]
        %v273 = vld [vmem:[#allocation5 + $0x18] sm:$0xff]
        %v274 = vld [vmem:[#allocation5 + $0x20] sm:$0xf]
        %v275 = vld [vmem:[#allocation5 + $0x24] sm:$0xff]
        %v276 = vld [vmem:[#allocation5 + $0x2c] sm:$0xff]
        %v277 = vld [vmem:[#allocation5 + $0x34] sm:$0xff]
        %v278 = vld [vmem:[#allocation5 + $0x3c] sm:$0xff]
        %v279 = vld [vmem:[#allocation5 + $0x44] sm:$0xf]
        %v280 = vld [vmem:[#allocation5 + $0x48] sm:$0xff]
        %v281 = vld [vmem:[#allocation5 + $0x50] sm:$0xff]
        %v282 = vld [vmem:[#allocation5 + $0x58] sm:$0xff]
        %v283 = vld [vmem:[#allocation5 + $0x60] sm:$0xff]
        %v284 = vld [vmem:[#allocation5 + $0x68] sm:$0xf]
        %v285 = vld [vmem:[#allocation5 + $0x6c] sm:$0xff]
        %v286 = vld [vmem:[#allocation5 + $0x74] sm:$0xff]
        %v287 = vld [vmem:[#allocation5 + $0x7c] sm:$0xff]
        %v288 = vld [vmem:[#allocation5 + $0x84] sm:$0xff]
        %v289 = vld [vmem:[#allocation5 + $0x8c] sm:$0xf]
        %v290 = vld [vmem:[#allocation5 + $0x90] sm:$0xff]
        %v291 = vld [vmem:[#allocation5 + $0x98] sm:$0xff]
        %v292 = vld [vmem:[#allocation5 + $0xa0] sm:$0xff]
        %v293 = vld [vmem:[#allocation5 + $0xa8] sm:$0xff]
        %v294 = vld [vmem:[#allocation5 + $0xb0] sm:$0xf]
        %v295 = vld [vmem:[#allocation5 + $0xb4] sm:$0xff]
        %v296 = vld [vmem:[#allocation5 + $0xbc] sm:$0xff]
        %v297 = vld [vmem:[#allocation5 + $0xc4] sm:$0xff]
        %v298 = vld [vmem:[#allocation5 + $0xcc] sm:$0xff]
        %v299 = vld [vmem:[#allocation5 + $0xd4] sm:$0xf]
        %v300 = vld [vmem:[#allocation5 + $0xd8] sm:$0xff]
        %v301 = vld [vmem:[#allocation5 + $0xe0] sm:$0xff]
        %v302 = vld [vmem:[#allocation5 + $0xe8] sm:$0xff]
        %v303 = vld [vmem:[#allocation5 + $0xf0] sm:$0xff]
        %v304 = vld [vmem:[#allocation5 + $0xf8] sm:$0xf]
        %v305 = vld [vmem:[#allocation5 + $0xfc] sm:$0xff]
        %v306 = vld [vmem:[#allocation5 + $0x104] sm:$0xff]
        %v307 = vld [vmem:[#allocation5 + $0x10c] sm:$0xff]
        %v308 = vld [vmem:[#allocation5 + $0x114] sm:$0xff]
        %v309 = vld [vmem:[#allocation5 + $0x11c] sm:$0xf]
        %v310 = vld [vmem:[#allocation5 + $0x120] sm:$0xff]
        %v311 = vld [vmem:[#allocation5 + $0x128] sm:$0xff]
        %v312 = vld [vmem:[#allocation5 + $0x130] sm:$0xff]
        %v313 = vld [vmem:[#allocation5 + $0x138] sm:$0xff]
        %v314 = vld [vmem:[#allocation5 + $0x140] sm:$0xf]
        %v315 = vld [vmem:[#allocation5 + $0x144] sm:$0xff]
        %v316 = vld [vmem:[#allocation5 + $0x14c] sm:$0xff]
        %v317 = vld [vmem:[#allocation5 + $0x154] sm:$0xff]
        %v318 = vld [vmem:[#allocation5 + $0x15c] sm:$0xff]
        %v319 = vld [vmem:[#allocation5 + $0x164] sm:$0xf]
        %v320 = vld [vmem:[#allocation5 + $0x168] sm:$0xff]
        %v321 = vld [vmem:[#allocation5 + $0x170] sm:$0xff]
        %v322 = vld [vmem:[#allocation5 + $0x178] sm:$0xff]
        %v323 = vld [vmem:[#allocation5 + $0x180] sm:$0xff]
        %v324 = vld [vmem:[#allocation5 + $0x188] sm:$0xf]
        %v325 = vld [vmem:[#allocation5 + $0x18c] sm:$0xff]
        %v326 = vld [vmem:[#allocation5 + $0x194] sm:$0xff]
        %v327 = vld [vmem:[#allocation5 + $0x19c] sm:$0xff]
        %v328 = vld [vmem:[#allocation5 + $0x1a4] sm:$0xff]
        %v329 = vld [vmem:[#allocation5 + $0x1ac] sm:$0xf]
        %v330 = vld [vmem:[#allocation5 + $0x1b0] sm:$0xff]
        %v331 = vld [vmem:[#allocation5 + $0x1b8] sm:$0xff]
        %v332 = vld [vmem:[#allocation5 + $0x1c0] sm:$0xff]
        %v333 = vld [vmem:[#allocation5 + $0x1c8] sm:$0xff]
        %v334 = vld [vmem:[#allocation5 + $0x1d0] sm:$0xf]
        %v335 = vld [vmem:[#allocation5 + $0x1d4] sm:$0xff]
        %v336 = vld [vmem:[#allocation5 + $0x1dc] sm:$0xff]
        %v337 = vld [vmem:[#allocation5 + $0x1e4] sm:$0xff]
        %v338 = vld [vmem:[#allocation5 + $0x1ec] sm:$0xff]
        %v339 = vld [vmem:[#allocation5 + $0x1f4] sm:$0xf]
        %v340 = vld [vmem:[#allocation5 + $0x1f8] sm:$0xff]
        %v341 = vld [vmem:[#allocation5 + $0x200] sm:$0xff]
        %v342 = vld [vmem:[#allocation5 + $0x208] sm:$0xff]
        %v343 = vld [vmem:[#allocation5 + $0x210] sm:$0xff]
        %v344 = vld [vmem:[#allocation5 + $0x218] sm:$0xf]
        %v345 = vld [vmem:[#allocation5 + $0x21c] sm:$0xff]
        %v346 = vld [vmem:[#allocation5 + $0x224] sm:$0xff]
        %v347 = vld [vmem:[#allocation5 + $0x22c] sm:$0xff]
        %v348 = vld [vmem:[#allocation5 + $0x234] sm:$0xff]
        %v349 = vld [vmem:[#allocation5 + $0x23c] sm:$0xf]
        %v350 = vld [vmem:[#allocation5 + $0x240] sm:$0xff]
        %v351 = vld [vmem:[#allocation5 + $0x248] sm:$0xff]
        %v352 = vld [vmem:[#allocation5 + $0x250] sm:$0xff]
        %v353 = vld [vmem:[#allocation5 + $0x258] sm:$0xff]
        %v354 = vld [vmem:[#allocation5 + $0x260] sm:$0xf]
        %v355 = vld [vmem:[#allocation5 + $0x264] sm:$0xff]
        %v356 = vld [vmem:[#allocation5 + $0x26c] sm:$0xff]
        %v357 = vld [vmem:[#allocation5 + $0x274] sm:$0xff]
        %v358 = vld [vmem:[#allocation5 + $0x27c] sm:$0xff]
        %v359 = vld [vmem:[#allocation5 + $0x284] sm:$0xf]
        %v360 = vld [vmem:[#allocation5 + $0x288] sm:$0xff]
        %v361 = vld [vmem:[#allocation5 + $0x290] sm:$0xff]
        %v362 = vld [vmem:[#allocation5 + $0x298] sm:$0xff]
        %v363 = vld [vmem:[#allocation5 + $0x2a0] sm:$0xff]
        %v364 = vld [vmem:[#allocation5 + $0x2a8] sm:$0xf]
        %v365 = vld [vmem:[#allocation5 + $0x2ac] sm:$0xff]
        %v366 = vld [vmem:[#allocation5 + $0x2b4] sm:$0xff]
        %v367 = vld [vmem:[#allocation5 + $0x2bc] sm:$0xff]
        %v368 = vld [vmem:[#allocation5 + $0x2c4] sm:$0xff]
        %v369 = vld [vmem:[#allocation5 + $0x2cc] sm:$0xf]
        %v370 = vld [vmem:[#allocation5 + $0x2d0] sm:$0xff]
        %v371 = vld [vmem:[#allocation5 + $0x2d8] sm:$0xff]
        %v372 = vld [vmem:[#allocation5 + $0x2e0] sm:$0xff]
        %v373 = vld [vmem:[#allocation5 + $0x2e8] sm:$0xff]
        %v374 = vld [vmem:[#allocation5 + $0x2f0] sm:$0xf]
        %v375 = vld [vmem:[#allocation5 + $0x2f4] sm:$0xff]
        %v376 = vld [vmem:[#allocation5 + $0x2fc] sm:$0xff]
        %v377 = vld [vmem:[#allocation5 + $0x304] sm:$0xff]
        %v378 = vld [vmem:[#allocation5 + $0x30c] sm:$0xff]
        %v379 = vld [vmem:[#allocation5 + $0x314] sm:$0xf]
        %v380 = vld [vmem:[#allocation5 + $0x318] sm:$0xff]
        %v381 = vld [vmem:[#allocation5 + $0x320] sm:$0xff]
        %v382 = vld [vmem:[#allocation5 + $0x328] sm:$0xff]
        %v383 = vld [vmem:[#allocation5 + $0x330] sm:$0xff]
        %v384 = vld [vmem:[#allocation5 + $0x338] sm:$0xf]
        %v385 = vld [vmem:[#allocation5 + $0x33c] sm:$0xff]
        %v386 = vld [vmem:[#allocation5 + $0x344] sm:$0xff]
        %v387 = vld [vmem:[#allocation5 + $0x34c] sm:$0xff]
        %v388 = vld [vmem:[#allocation5 + $0x354] sm:$0xff]
        %v389 = vld [vmem:[#allocation5 + $0x35c] sm:$0xf]
        %v390 = vld [vmem:[#allocation5 + $0x360] sm:$0xff]
        %v391 = vld [vmem:[#allocation5 + $0x368] sm:$0xff]
        %v392 = vld [vmem:[#allocation5 + $0x370] sm:$0xff]
        %v393 = vld [vmem:[#allocation5 + $0x378] sm:$0xff]
        %v394 = vld [vmem:[#allocation5 + $0x380] sm:$0xf]
        %v395 = vld [vmem:[#allocation5 + $0x384] sm:$0xff]
        %v396 = vld [vmem:[#allocation5 + $0x38c] sm:$0xff]
        %v397 = vld [vmem:[#allocation5 + $0x394] sm:$0xff]
        %v398 = vld [vmem:[#allocation5 + $0x39c] sm:$0xff]
        %v399 = vld [vmem:[#allocation5 + $0x3a4] sm:$0xf]
        %v400 = vld [vmem:[#allocation5 + $0x3a8] sm:$0xff]
        %v401 = vld [vmem:[#allocation5 + $0x3b0] sm:$0xff]
        %v402 = vld [vmem:[#allocation5 + $0x3b8] sm:$0xff]
        %v403 = vld [vmem:[#allocation5 + $0x3c0] sm:$0xff]
        %v404 = vld [vmem:[#allocation5 + $0x3c8] sm:$0xf]
        %v405 = vld [vmem:[#allocation5 + $0x3cc] sm:$0xff]
        %v406 = vld [vmem:[#allocation5 + $0x3d4] sm:$0xff]
        %v407 = vld [vmem:[#allocation5 + $0x3dc] sm:$0xff]
        %v408 = vld [vmem:[#allocation5 + $0x3e4] sm:$0xff]
        %v409 = vld [vmem:[#allocation5 + $0x3ec] sm:$0xf]
        %v410 = vld [vmem:[#allocation5 + $0x3f0] sm:$0xff]
        %v411 = vld [vmem:[#allocation5 + $0x3f8] sm:$0xff]
        %v412 = vld [vmem:[#allocation5 + $0x400] sm:$0xff]
        %v413 = vld [vmem:[#allocation5 + $0x408] sm:$0xff]
        %v414 = vld [vmem:[#allocation5 + $0x410] sm:$0xf]
        %v415 = vld [vmem:[#allocation5 + $0x414] sm:$0xff]
        %v416 = vld [vmem:[#allocation5 + $0x41c] sm:$0xff]
        %v417 = vld [vmem:[#allocation5 + $0x424] sm:$0xff]
        %v418 = vld [vmem:[#allocation5 + $0x42c] sm:$0xff]
        %v419 = vld [vmem:[#allocation5 + $0x434] sm:$0xf]
        %v420 = vld [vmem:[#allocation5 + $0x438] sm:$0xff]
        %v421 = vld [vmem:[#allocation5 + $0x440] sm:$0xff]
        %v422 = vld [vmem:[#allocation5 + $0x448] sm:$0xff]
        %v423 = vld [vmem:[#allocation5 + $0x450] sm:$0xff]
        %v424 = vld [vmem:[#allocation5 + $0x458] sm:$0xf]
        %v425 = vld [vmem:[#allocation5 + $0x45c] sm:$0xff]
        %v426 = vld [vmem:[#allocation5 + $0x464] sm:$0xff]
        %v427 = vld [vmem:[#allocation5 + $0x46c] sm:$0xff]
        %v428 = vld [vmem:[#allocation5 + $0x474] sm:$0xff]
        %v429 = vld [vmem:[#allocation5 + $0x47c] sm:$0xf]
        %v430 = vld [vmem:[#allocation5 + $0x480] sm:$0xff]
        %v431 = vld [vmem:[#allocation5 + $0x488] sm:$0xff]
        %v432 = vld [vmem:[#allocation5 + $0x490] sm:$0xff]
        %v433 = vld [vmem:[#allocation5 + $0x498] sm:$0xff]
        %v434 = vld [vmem:[#allocation5 + $0x4a0] sm:$0xf]
        %v435 = vld [vmem:[#allocation5 + $0x4a4] sm:$0xff]
        %v436 = vld [vmem:[#allocation5 + $0x4ac] sm:$0xff]
        %v437 = vld [vmem:[#allocation5 + $0x4b4] sm:$0xff]
        %v438 = vld [vmem:[#allocation5 + $0x4bc] sm:$0xff]
        %v439 = vld [vmem:[#allocation5 + $0x4c4] sm:$0xf]
        %v440 = vld [vmem:[#allocation5 + $0x4c8] sm:$0xff]
        %v441 = vld [vmem:[#allocation5 + $0x4d0] sm:$0xff]
        %v442 = vld [vmem:[#allocation5 + $0x4d8] sm:$0xff]
        %v443 = vld [vmem:[#allocation5 + $0x4e0] sm:$0xff]
        %v444 = vld [vmem:[#allocation5 + $0x4e8] sm:$0xf]
        %v445 = vld [vmem:[#allocation5 + $0x4ec] sm:$0xff]
        %v446 = vld [vmem:[#allocation5 + $0x4f4] sm:$0xff]
        %v447 = vld [vmem:[#allocation5 + $0x4fc] sm:$0xff]
        %v448 = vld [vmem:[#allocation5 + $0x504] sm:$0xff]
        %v449 = vld [vmem:[#allocation5 + $0x50c] sm:$0xf]
        %v450 = vld [vmem:[#allocation5 + $0x510] sm:$0xff]
        %v451 = vld [vmem:[#allocation5 + $0x518] sm:$0xff]
        %v452 = vld [vmem:[#allocation5 + $0x520] sm:$0xff]
        %v453 = vld [vmem:[#allocation5 + $0x528] sm:$0xff]
        %v454 = vld [vmem:[#allocation5 + $0x530] sm:$0xf]
        %v455 = vld [vmem:[#allocation5 + $0x534] sm:$0xff]
        %v456 = vld [vmem:[#allocation5 + $0x53c] sm:$0xff]
        %v457 = vld [vmem:[#allocation5 + $0x544] sm:$0xff]
        %v458 = vld [vmem:[#allocation5 + $0x54c] sm:$0xff]
        %v459 = vld [vmem:[#allocation5 + $0x554] sm:$0xf]
        %v460 = vld [vmem:[#allocation5 + $0x558] sm:$0xff]
        %v461 = vld [vmem:[#allocation5 + $0x560] sm:$0xff]
        %v462 = vld [vmem:[#allocation5 + $0x568] sm:$0xff]
        %v463 = vld [vmem:[#allocation5 + $0x570] sm:$0xff]
        %v464 = vld [vmem:[#allocation5 + $0x578] sm:$0xf]
        %v465 = vld [vmem:[#allocation5 + $0x57c] sm:$0xff]
        %v466 = vld [vmem:[#allocation5 + $0x584] sm:$0xff]
        %v467 = vld [vmem:[#allocation5 + $0x58c] sm:$0xff]
        %v468 = vld [vmem:[#allocation5 + $0x594] sm:$0xff]
        %v469 = vld [vmem:[#allocation5 + $0x59c] sm:$0xf]
        %v470 = vld [vmem:[#allocation5 + $0x5a0] sm:$0xff]
        %v471 = vld [vmem:[#allocation5 + $0x5a8] sm:$0xff]
        %v472 = vld [vmem:[#allocation5 + $0x5b0] sm:$0xff]
        %v473 = vld [vmem:[#allocation5 + $0x5b8] sm:$0xff]
        %v474 = vld [vmem:[#allocation5 + $0x5c0] sm:$0xf]
        %v475 = vld [vmem:[#allocation5 + $0x5c4] sm:$0xff]
        %v476 = vld [vmem:[#allocation5 + $0x5cc] sm:$0xff]
        %v477 = vld [vmem:[#allocation5 + $0x5d4] sm:$0xff]
        %v478 = vld [vmem:[#allocation5 + $0x5dc] sm:$0xff]
        %v479 = vld [vmem:[#allocation5 + $0x5e4] sm:$0xf]
        %v480 = vld [vmem:[#allocation5 + $0x5e8] sm:$0xff]
        %v481 = vld [vmem:[#allocation5 + $0x5f0] sm:$0xff]
        %v482 = vld [vmem:[#allocation5 + $0x5f8] sm:$0xff]
        %v483 = vld [vmem:[#allocation5 + $0x600] sm:$0xff]
        %v484 = vld [vmem:[#allocation5 + $0x608] sm:$0xf]
        %v485 = vld [vmem:[#allocation5 + $0x60c] sm:$0xff]
        %v486 = vld [vmem:[#allocation5 + $0x614] sm:$0xff]
        %v487 = vld [vmem:[#allocation5 + $0x61c] sm:$0xff]
        %v488 = vld [vmem:[#allocation5 + $0x624] sm:$0xff]
        %v489 = vld [vmem:[#allocation5 + $0x62c] sm:$0xf]
        %v490 = vld [vmem:[#allocation5 + $0x630] sm:$0xff]
        %v491 = vld [vmem:[#allocation5 + $0x638] sm:$0xff]
        %v492 = vld [vmem:[#allocation5 + $0x640] sm:$0xff]
        %v493 = vld [vmem:[#allocation5 + $0x648] sm:$0xff]
        %v494 = vld [vmem:[#allocation5 + $0x650] sm:$0xf]
        %v495 = vld [vmem:[#allocation5 + $0x654] sm:$0xff]
        %v496 = vld [vmem:[#allocation5 + $0x65c] sm:$0xff]
        %v497 = vld [vmem:[#allocation5 + $0x664] sm:$0xff]
        %v498 = vld [vmem:[#allocation5 + $0x66c] sm:$0xff]
        %v499 = vld [vmem:[#allocation5 + $0x674] sm:$0xf]
        %v500 = vld [vmem:[#allocation5 + $0x678] sm:$0xff]
        %v501 = vld [vmem:[#allocation5 + $0x680] sm:$0xff]
        %v502 = vld [vmem:[#allocation5 + $0x688] sm:$0xff]
        %v503 = vld [vmem:[#allocation5 + $0x690] sm:$0xff]
        %v504 = vld [vmem:[#allocation5 + $0x698] sm:$0xf]
        %v505 = vld [vmem:[#allocation5 + $0x69c] sm:$0xff]
        %v506 = vld [vmem:[#allocation5 + $0x6a4] sm:$0xff]
        %v507 = vld [vmem:[#allocation5 + $0x6ac] sm:$0xff]
        %v508 = vld [vmem:[#allocation5 + $0x6b4] sm:$0xff]
        %v509 = vld [vmem:[#allocation5 + $0x6bc] sm:$0xf]
        %v514 = vunpack.c.l.b16 %v266
        %v515 = vunpack.c.h.b16 %v266
        %v516 = vunpack.c.l.b16 %v267
        %v517 = vunpack.c.l.b16 %v268
        %v518 = vunpack.c.h.b16 %v268
        %v519 = vunpack.c.l.b16 %v269
        %v520 = vpack.c.b16 %v517, %v514
        %v521 = vpack.c.b16 %v518, %v515
        %v522 = vpack.c.b16 %v519, %v516
        %v766 = vunpack.c.l.b16 %v270
        %v767 = vunpack.c.h.b16 %v270
        %v768 = vunpack.c.l.b16 %v271
        %v769 = vunpack.c.h.b16 %v271
        %v770 = vunpack.c.l.b16 %v272
        %v771 = vunpack.c.h.b16 %v272
        %v772 = vunpack.c.l.b16 %v273
        %v773 = vunpack.c.h.b16 %v273
        %v774 = vunpack.c.l.b16 %v274
        %v775 = vunpack.c.l.b16 %v275
        %v776 = vunpack.c.h.b16 %v275
        %v777 = vunpack.c.l.b16 %v276
        %v778 = vunpack.c.h.b16 %v276
        %v779 = vunpack.c.l.b16 %v277
        %v780 = vunpack.c.h.b16 %v277
        %v781 = vunpack.c.l.b16 %v278
        %v782 = vunpack.c.h.b16 %v278
        %v783 = vunpack.c.l.b16 %v279
        %v784 = vunpack.c.l.b16 %v280
        %v785 = vunpack.c.h.b16 %v280
        %v786 = vunpack.c.l.b16 %v281
        %v787 = vunpack.c.h.b16 %v281
        %v788 = vunpack.c.l.b16 %v282
        %v789 = vunpack.c.h.b16 %v282
        %v790 = vunpack.c.l.b16 %v283
        %v791 = vunpack.c.h.b16 %v283
        %v792 = vunpack.c.l.b16 %v284
        %v793 = vunpack.c.l.b16 %v285
        %v794 = vunpack.c.h.b16 %v285
        %v795 = vunpack.c.l.b16 %v286
        %v796 = vunpack.c.h.b16 %v286
        %v797 = vunpack.c.l.b16 %v287
        %v798 = vunpack.c.h.b16 %v287
        %v799 = vunpack.c.l.b16 %v288
        %v800 = vunpack.c.h.b16 %v288
        %v801 = vunpack.c.l.b16 %v289
        %v802 = vunpack.c.l.b16 %v290
        %v803 = vunpack.c.h.b16 %v290
        %v804 = vunpack.c.l.b16 %v291
        %v805 = vunpack.c.h.b16 %v291
        %v806 = vunpack.c.l.b16 %v292
        %v807 = vunpack.c.h.b16 %v292
        %v808 = vunpack.c.l.b16 %v293
        %v809 = vunpack.c.h.b16 %v293
        %v810 = vunpack.c.l.b16 %v294
        %v811 = vunpack.c.l.b16 %v295
        %v812 = vunpack.c.h.b16 %v295
        %v813 = vunpack.c.l.b16 %v296
        %v814 = vunpack.c.h.b16 %v296
        %v815 = vunpack.c.l.b16 %v297
        %v816 = vunpack.c.h.b16 %v297
        %v817 = vunpack.c.l.b16 %v298
        %v818 = vunpack.c.h.b16 %v298
        %v819 = vunpack.c.l.b16 %v299
        %v820 = vunpack.c.l.b16 %v300
        %v821 = vunpack.c.h.b16 %v300
        %v822 = vunpack.c.l.b16 %v301
        %v823 = vunpack.c.h.b16 %v301
        %v824 = vunpack.c.l.b16 %v302
        %v825 = vunpack.c.h.b16 %v302
        %v826 = vunpack.c.l.b16 %v303
        %v827 = vunpack.c.h.b16 %v303
        %v828 = vunpack.c.l.b16 %v304
        %v829 = vunpack.c.l.b16 %v305
        %v830 = vunpack.c.h.b16 %v305
        %v831 = vunpack.c.l.b16 %v306
        %v832 = vunpack.c.h.b16 %v306
        %v833 = vunpack.c.l.b16 %v307
        %v834 = vunpack.c.h.b16 %v307
        %v835 = vunpack.c.l.b16 %v308
        %v836 = vunpack.c.h.b16 %v308
        %v837 = vunpack.c.l.b16 %v309
        %v838 = vunpack.c.l.b16 %v310
        %v839 = vunpack.c.h.b16 %v310
        %v840 = vunpack.c.l.b16 %v311
        %v841 = vunpack.c.h.b16 %v311
        %v842 = vunpack.c.l.b16 %v312
        %v843 = vunpack.c.h.b16 %v312
        %v844 = vunpack.c.l.b16 %v313
        %v845 = vunpack.c.h.b16 %v313
        %v846 = vunpack.c.l.b16 %v314
        %v847 = vunpack.c.l.b16 %v315
        %v848 = vunpack.c.h.b16 %v315
        %v849 = vunpack.c.l.b16 %v316
        %v850 = vunpack.c.h.b16 %v316
        %v851 = vunpack.c.l.b16 %v317
        %v852 = vunpack.c.h.b16 %v317
        %v853 = vunpack.c.l.b16 %v318
        %v854 = vunpack.c.h.b16 %v318
        %v855 = vunpack.c.l.b16 %v319
        %v856 = vunpack.c.l.b16 %v320
        %v857 = vunpack.c.h.b16 %v320
        %v858 = vunpack.c.l.b16 %v321
        %v859 = vunpack.c.h.b16 %v321
        %v860 = vunpack.c.l.b16 %v322
        %v861 = vunpack.c.h.b16 %v322
        %v862 = vunpack.c.l.b16 %v323
        %v863 = vunpack.c.h.b16 %v323
        %v864 = vunpack.c.l.b16 %v324
        %v865 = vunpack.c.l.b16 %v325
        %v866 = vunpack.c.h.b16 %v325
        %v867 = vunpack.c.l.b16 %v326
        %v868 = vunpack.c.h.b16 %v326
        %v869 = vunpack.c.l.b16 %v327
        %v870 = vunpack.c.h.b16 %v327
        %v871 = vunpack.c.l.b16 %v328
        %v872 = vunpack.c.h.b16 %v328
        %v873 = vunpack.c.l.b16 %v329
        %v874 = vunpack.c.l.b16 %v330
        %v875 = vunpack.c.h.b16 %v330
        %v876 = vunpack.c.l.b16 %v331
        %v877 = vunpack.c.h.b16 %v331
        %v878 = vunpack.c.l.b16 %v332
        %v879 = vunpack.c.h.b16 %v332
        %v880 = vunpack.c.l.b16 %v333
        %v881 = vunpack.c.h.b16 %v333
        %v882 = vunpack.c.l.b16 %v334
        %v883 = vunpack.c.l.b16 %v335
        %v884 = vunpack.c.h.b16 %v335
        %v885 = vunpack.c.l.b16 %v336
        %v886 = vunpack.c.h.b16 %v336
        %v887 = vunpack.c.l.b16 %v337
        %v888 = vunpack.c.h.b16 %v337
        %v889 = vunpack.c.l.b16 %v338
        %v890 = vunpack.c.h.b16 %v338
        %v891 = vunpack.c.l.b16 %v339
        %v892 = vunpack.c.l.b16 %v340
        %v893 = vunpack.c.h.b16 %v340
        %v894 = vunpack.c.l.b16 %v341
        %v895 = vunpack.c.h.b16 %v341
        %v896 = vunpack.c.l.b16 %v342
        %v897 = vunpack.c.h.b16 %v342
        %v898 = vunpack.c.l.b16 %v343
        %v899 = vunpack.c.h.b16 %v343
        %v900 = vunpack.c.l.b16 %v344
        %v901 = vunpack.c.l.b16 %v345
        %v902 = vunpack.c.h.b16 %v345
        %v903 = vunpack.c.l.b16 %v346
        %v904 = vunpack.c.h.b16 %v346
        %v905 = vunpack.c.l.b16 %v347
        %v906 = vunpack.c.h.b16 %v347
        %v907 = vunpack.c.l.b16 %v348
        %v908 = vunpack.c.h.b16 %v348
        %v909 = vunpack.c.l.b16 %v349
        %v910 = vunpack.c.l.b16 %v350
        %v911 = vunpack.c.h.b16 %v350
        %v912 = vunpack.c.l.b16 %v351
        %v913 = vunpack.c.h.b16 %v351
        %v914 = vunpack.c.l.b16 %v352
        %v915 = vunpack.c.h.b16 %v352
        %v916 = vunpack.c.l.b16 %v353
        %v917 = vunpack.c.h.b16 %v353
        %v918 = vunpack.c.l.b16 %v354
        %v919 = vunpack.c.l.b16 %v355
        %v920 = vunpack.c.h.b16 %v355
        %v921 = vunpack.c.l.b16 %v356
        %v922 = vunpack.c.h.b16 %v356
        %v923 = vunpack.c.l.b16 %v357
        %v924 = vunpack.c.h.b16 %v357
        %v925 = vunpack.c.l.b16 %v358
        %v926 = vunpack.c.h.b16 %v358
        %v927 = vunpack.c.l.b16 %v359
        %v928 = vunpack.c.l.b16 %v360
        %v929 = vunpack.c.h.b16 %v360
        %v930 = vunpack.c.l.b16 %v361
        %v931 = vunpack.c.h.b16 %v361
        %v932 = vunpack.c.l.b16 %v362
        %v933 = vunpack.c.h.b16 %v362
        %v934 = vunpack.c.l.b16 %v363
        %v935 = vunpack.c.h.b16 %v363
        %v936 = vunpack.c.l.b16 %v364
        %v937 = vunpack.c.l.b16 %v365
        %v938 = vunpack.c.h.b16 %v365
        %v939 = vunpack.c.l.b16 %v366
        %v940 = vunpack.c.h.b16 %v366
        %v941 = vunpack.c.l.b16 %v367
        %v942 = vunpack.c.h.b16 %v367
        %v943 = vunpack.c.l.b16 %v368
        %v944 = vunpack.c.h.b16 %v368
        %v945 = vunpack.c.l.b16 %v369
        %v946 = vunpack.c.l.b16 %v370
        %v947 = vunpack.c.h.b16 %v370
        %v948 = vunpack.c.l.b16 %v371
        %v949 = vunpack.c.h.b16 %v371
        %v950 = vunpack.c.l.b16 %v372
        %v951 = vunpack.c.h.b16 %v372
        %v952 = vunpack.c.l.b16 %v373
        %v953 = vunpack.c.h.b16 %v373
        %v954 = vunpack.c.l.b16 %v374
        %v955 = vunpack.c.l.b16 %v375
        %v956 = vunpack.c.h.b16 %v375
        %v957 = vunpack.c.l.b16 %v376
        %v958 = vunpack.c.h.b16 %v376
        %v959 = vunpack.c.l.b16 %v377
        %v960 = vunpack.c.h.b16 %v377
        %v961 = vunpack.c.l.b16 %v378
        %v962 = vunpack.c.h.b16 %v378
        %v963 = vunpack.c.l.b16 %v379
        %v964 = vunpack.c.l.b16 %v380
        %v965 = vunpack.c.h.b16 %v380
        %v966 = vunpack.c.l.b16 %v381
        %v967 = vunpack.c.h.b16 %v381
        %v968 = vunpack.c.l.b16 %v382
        %v969 = vunpack.c.h.b16 %v382
        %v970 = vunpack.c.l.b16 %v383
        %v971 = vunpack.c.h.b16 %v383
        %v972 = vunpack.c.l.b16 %v384
        %v973 = vunpack.c.l.b16 %v385
        %v974 = vunpack.c.h.b16 %v385
        %v975 = vunpack.c.l.b16 %v386
        %v976 = vunpack.c.h.b16 %v386
        %v977 = vunpack.c.l.b16 %v387
        %v978 = vunpack.c.h.b16 %v387
        %v979 = vunpack.c.l.b16 %v388
        %v980 = vunpack.c.h.b16 %v388
        %v981 = vunpack.c.l.b16 %v389
        %v982 = vunpack.c.l.b16 %v390
        %v983 = vunpack.c.h.b16 %v390
        %v984 = vunpack.c.l.b16 %v391
        %v985 = vunpack.c.h.b16 %v391
        %v986 = vunpack.c.l.b16 %v392
        %v987 = vunpack.c.h.b16 %v392
        %v988 = vunpack.c.l.b16 %v393
        %v989 = vunpack.c.h.b16 %v393
        %v990 = vunpack.c.l.b16 %v394
        %v991 = vunpack.c.l.b16 %v395
        %v992 = vunpack.c.h.b16 %v395
        %v993 = vunpack.c.l.b16 %v396
        %v994 = vunpack.c.h.b16 %v396
        %v995 = vunpack.c.l.b16 %v397
        %v996 = vunpack.c.h.b16 %v397
        %v997 = vunpack.c.l.b16 %v398
        %v998 = vunpack.c.h.b16 %v398
        %v999 = vunpack.c.l.b16 %v399
        %v1000 = vunpack.c.l.b16 %v400
        %v1001 = vunpack.c.h.b16 %v400
        %v1002 = vunpack.c.l.b16 %v401
        %v1003 = vunpack.c.h.b16 %v401
        %v1004 = vunpack.c.l.b16 %v402
        %v1005 = vunpack.c.h.b16 %v402
        %v1006 = vunpack.c.l.b16 %v403
        %v1007 = vunpack.c.h.b16 %v403
        %v1008 = vunpack.c.l.b16 %v404
        %v1009 = vunpack.c.l.b16 %v405
        %v1010 = vunpack.c.h.b16 %v405
        %v1011 = vunpack.c.l.b16 %v406
        %v1012 = vunpack.c.h.b16 %v406
        %v1013 = vunpack.c.l.b16 %v407
        %v1014 = vunpack.c.h.b16 %v407
        %v1015 = vunpack.c.l.b16 %v408
        %v1016 = vunpack.c.h.b16 %v408
        %v1017 = vunpack.c.l.b16 %v409
        %v1018 = vunpack.c.l.b16 %v410
        %v1019 = vunpack.c.h.b16 %v410
        %v1020 = vunpack.c.l.b16 %v411
        %v1021 = vunpack.c.h.b16 %v411
        %v1022 = vunpack.c.l.b16 %v412
        %v1023 = vunpack.c.h.b16 %v412
        %v1024 = vunpack.c.l.b16 %v413
        %v1025 = vunpack.c.h.b16 %v413
        %v1026 = vunpack.c.l.b16 %v414
        %v1027 = vunpack.c.l.b16 %v415
        %v1028 = vunpack.c.h.b16 %v415
        %v1029 = vunpack.c.l.b16 %v416
        %v1030 = vunpack.c.h.b16 %v416
        %v1031 = vunpack.c.l.b16 %v417
        %v1032 = vunpack.c.h.b16 %v417
        %v1033 = vunpack.c.l.b16 %v418
        %v1034 = vunpack.c.h.b16 %v418
        %v1035 = vunpack.c.l.b16 %v419
        %v1036 = vunpack.c.l.b16 %v420
        %v1037 = vunpack.c.h.b16 %v420
        %v1038 = vunpack.c.l.b16 %v421
        %v1039 = vunpack.c.h.b16 %v421
        %v1040 = vunpack.c.l.b16 %v422
        %v1041 = vunpack.c.h.b16 %v422
        %v1042 = vunpack.c.l.b16 %v423
        %v1043 = vunpack.c.h.b16 %v423
        %v1044 = vunpack.c.l.b16 %v424
        %v1045 = vunpack.c.l.b16 %v425
        %v1046 = vunpack.c.h.b16 %v425
        %v1047 = vunpack.c.l.b16 %v426
        %v1048 = vunpack.c.h.b16 %v426
        %v1049 = vunpack.c.l.b16 %v427
        %v1050 = vunpack.c.h.b16 %v427
        %v1051 = vunpack.c.l.b16 %v428
        %v1052 = vunpack.c.h.b16 %v428
        %v1053 = vunpack.c.l.b16 %v429
        %v1054 = vunpack.c.l.b16 %v430
        %v1055 = vunpack.c.h.b16 %v430
        %v1056 = vunpack.c.l.b16 %v431
        %v1057 = vunpack.c.h.b16 %v431
        %v1058 = vunpack.c.l.b16 %v432
        %v1059 = vunpack.c.h.b16 %v432
        %v1060 = vunpack.c.l.b16 %v433
        %v1061 = vunpack.c.h.b16 %v433
        %v1062 = vunpack.c.l.b16 %v434
        %v1063 = vunpack.c.l.b16 %v435
        %v1064 = vunpack.c.h.b16 %v435
        %v1065 = vunpack.c.l.b16 %v436
        %v1066 = vunpack.c.h.b16 %v436
        %v1067 = vunpack.c.l.b16 %v437
        %v1068 = vunpack.c.h.b16 %v437
        %v1069 = vunpack.c.l.b16 %v438
        %v1070 = vunpack.c.h.b16 %v438
        %v1071 = vunpack.c.l.b16 %v439
        %v1072 = vunpack.c.l.b16 %v440
        %v1073 = vunpack.c.h.b16 %v440
        %v1074 = vunpack.c.l.b16 %v441
        %v1075 = vunpack.c.h.b16 %v441
        %v1076 = vunpack.c.l.b16 %v442
        %v1077 = vunpack.c.h.b16 %v442
        %v1078 = vunpack.c.l.b16 %v443
        %v1079 = vunpack.c.h.b16 %v443
        %v1080 = vunpack.c.l.b16 %v444
        %v1081 = vunpack.c.l.b16 %v445
        %v1082 = vunpack.c.h.b16 %v445
        %v1083 = vunpack.c.l.b16 %v446
        %v1084 = vunpack.c.h.b16 %v446
        %v1085 = vunpack.c.l.b16 %v447
        %v1086 = vunpack.c.h.b16 %v447
        %v1087 = vunpack.c.l.b16 %v448
        %v1088 = vunpack.c.h.b16 %v448
        %v1089 = vunpack.c.l.b16 %v449
        %v1090 = vunpack.c.l.b16 %v450
        %v1091 = vunpack.c.h.b16 %v450
        %v1092 = vunpack.c.l.b16 %v451
        %v1093 = vunpack.c.h.b16 %v451
        %v1094 = vunpack.c.l.b16 %v452
        %v1095 = vunpack.c.h.b16 %v452
        %v1096 = vunpack.c.l.b16 %v453
        %v1097 = vunpack.c.h.b16 %v453
        %v1098 = vunpack.c.l.b16 %v454
        %v1099 = vunpack.c.l.b16 %v455
        %v1100 = vunpack.c.h.b16 %v455
        %v1101 = vunpack.c.l.b16 %v456
        %v1102 = vunpack.c.h.b16 %v456
        %v1103 = vunpack.c.l.b16 %v457
        %v1104 = vunpack.c.h.b16 %v457
        %v1105 = vunpack.c.l.b16 %v458
        %v1106 = vunpack.c.h.b16 %v458
        %v1107 = vunpack.c.l.b16 %v459
        %v1108 = vunpack.c.l.b16 %v460
        %v1109 = vunpack.c.h.b16 %v460
        %v1110 = vunpack.c.l.b16 %v461
        %v1111 = vunpack.c.h.b16 %v461
        %v1112 = vunpack.c.l.b16 %v462
        %v1113 = vunpack.c.h.b16 %v462
        %v1114 = vunpack.c.l.b16 %v463
        %v1115 = vunpack.c.h.b16 %v463
        %v1116 = vunpack.c.l.b16 %v464
        %v1117 = vunpack.c.l.b16 %v465
        %v1118 = vunpack.c.h.b16 %v465
        %v1119 = vunpack.c.l.b16 %v466
        %v1120 = vunpack.c.h.b16 %v466
        %v1121 = vunpack.c.l.b16 %v467
        %v1122 = vunpack.c.h.b16 %v467
        %v1123 = vunpack.c.l.b16 %v468
        %v1124 = vunpack.c.h.b16 %v468
        %v1125 = vunpack.c.l.b16 %v469
        %v1126 = vunpack.c.l.b16 %v470
        %v1127 = vunpack.c.h.b16 %v470
        %v1128 = vunpack.c.l.b16 %v471
        %v1129 = vunpack.c.h.b16 %v471
        %v1130 = vunpack.c.l.b16 %v472
        %v1131 = vunpack.c.h.b16 %v472
        %v1132 = vunpack.c.l.b16 %v473
        %v1133 = vunpack.c.h.b16 %v473
        %v1134 = vunpack.c.l.b16 %v474
        %v1135 = vunpack.c.l.b16 %v475
        %v1136 = vunpack.c.h.b16 %v475
        %v1137 = vunpack.c.l.b16 %v476
        %v1138 = vunpack.c.h.b16 %v476
        %v1139 = vunpack.c.l.b16 %v477
        %v1140 = vunpack.c.h.b16 %v477
        %v1141 = vunpack.c.l.b16 %v478
        %v1142 = vunpack.c.h.b16 %v478
        %v1143 = vunpack.c.l.b16 %v479
        %v1144 = vunpack.c.l.b16 %v480
        %v1145 = vunpack.c.h.b16 %v480
        %v1146 = vunpack.c.l.b16 %v481
        %v1147 = vunpack.c.h.b16 %v481
        %v1148 = vunpack.c.l.b16 %v482
        %v1149 = vunpack.c.h.b16 %v482
        %v1150 = vunpack.c.l.b16 %v483
        %v1151 = vunpack.c.h.b16 %v483
        %v1152 = vunpack.c.l.b16 %v484
        %v1153 = vunpack.c.l.b16 %v485
        %v1154 = vunpack.c.h.b16 %v485
        %v1155 = vunpack.c.l.b16 %v486
        %v1156 = vunpack.c.h.b16 %v486
        %v1157 = vunpack.c.l.b16 %v487
        %v1158 = vunpack.c.h.b16 %v487
        %v1159 = vunpack.c.l.b16 %v488
        %v1160 = vunpack.c.h.b16 %v488
        %v1161 = vunpack.c.l.b16 %v489
        %v1162 = vunpack.c.l.b16 %v490
        %v1163 = vunpack.c.h.b16 %v490
        %v1164 = vunpack.c.l.b16 %v491
        %v1165 = vunpack.c.h.b16 %v491
        %v1166 = vunpack.c.l.b16 %v492
        %v1167 = vunpack.c.h.b16 %v492
        %v1168 = vunpack.c.l.b16 %v493
        %v1169 = vunpack.c.h.b16 %v493
        %v1170 = vunpack.c.l.b16 %v494
        %v1171 = vunpack.c.l.b16 %v495
        %v1172 = vunpack.c.h.b16 %v495
        %v1173 = vunpack.c.l.b16 %v496
        %v1174 = vunpack.c.h.b16 %v496
        %v1175 = vunpack.c.l.b16 %v497
        %v1176 = vunpack.c.h.b16 %v497
        %v1177 = vunpack.c.l.b16 %v498
        %v1178 = vunpack.c.h.b16 %v498
        %v1179 = vunpack.c.l.b16 %v499
        %v1180 = vunpack.c.l.b16 %v500
        %v1181 = vunpack.c.h.b16 %v500
        %v1182 = vunpack.c.l.b16 %v501
        %v1183 = vunpack.c.h.b16 %v501
        %v1184 = vunpack.c.l.b16 %v502
        %v1185 = vunpack.c.h.b16 %v502
        %v1186 = vunpack.c.l.b16 %v503
        %v1187 = vunpack.c.h.b16 %v503
        %v1188 = vunpack.c.l.b16 %v504
        %v1189 = vunpack.c.l.b16 %v505
        %v1190 = vunpack.c.h.b16 %v505
        %v1191 = vunpack.c.l.b16 %v506
        %v1192 = vunpack.c.h.b16 %v506
        %v1193 = vunpack.c.l.b16 %v507
        %v1194 = vunpack.c.h.b16 %v507
        %v1195 = vunpack.c.l.b16 %v508
        %v1196 = vunpack.c.h.b16 %v508
        %v1197 = vunpack.c.l.b16 %v509
        %v1198 = vpack.c.b16 %v775, %v766
        %v1199 = vpack.c.b16 %v776, %v767
        %v1200 = vpack.c.b16 %v777, %v768
        %v1201 = vpack.c.b16 %v778, %v769
        %v1202 = vpack.c.b16 %v779, %v770
        %v1203 = vpack.c.b16 %v780, %v771
        %v1204 = vpack.c.b16 %v781, %v772
        %v1205 = vpack.c.b16 %v782, %v773
        %v1206 = vpack.c.b16 %v783, %v774
        %v1207 = vpack.c.b16 %v793, %v784
        %v1208 = vpack.c.b16 %v794, %v785
        %v1209 = vpack.c.b16 %v795, %v786
        %v1210 = vpack.c.b16 %v796, %v787
        %v1211 = vpack.c.b16 %v797, %v788
        %v1212 = vpack.c.b16 %v798, %v789
        %v1213 = vpack.c.b16 %v799, %v790
        %v1214 = vpack.c.b16 %v800, %v791
        %v1215 = vpack.c.b16 %v801, %v792
        %v1216 = vpack.c.b16 %v811, %v802
        %v1217 = vpack.c.b16 %v812, %v803
        %v1218 = vpack.c.b16 %v813, %v804
        %v1219 = vpack.c.b16 %v814, %v805
        %v1220 = vpack.c.b16 %v815, %v806
        %v1221 = vpack.c.b16 %v816, %v807
        %v1222 = vpack.c.b16 %v817, %v808
        %v1223 = vpack.c.b16 %v818, %v809
        %v1224 = vpack.c.b16 %v819, %v810
        %v1225 = vpack.c.b16 %v829, %v820
        %v1226 = vpack.c.b16 %v830, %v821
        %v1227 = vpack.c.b16 %v831, %v822
        %v1228 = vpack.c.b16 %v832, %v823
        %v1229 = vpack.c.b16 %v833, %v824
        %v1230 = vpack.c.b16 %v834, %v825
        %v1231 = vpack.c.b16 %v835, %v826
        %v1232 = vpack.c.b16 %v836, %v827
        %v1233 = vpack.c.b16 %v837, %v828
        %v1234 = vpack.c.b16 %v847, %v838
        %v1235 = vpack.c.b16 %v848, %v839
        %v1236 = vpack.c.b16 %v849, %v840
        %v1237 = vpack.c.b16 %v850, %v841
        %v1238 = vpack.c.b16 %v851, %v842
        %v1239 = vpack.c.b16 %v852, %v843
        %v1240 = vpack.c.b16 %v853, %v844
        %v1241 = vpack.c.b16 %v854, %v845
        %v1242 = vpack.c.b16 %v855, %v846
        %v1243 = vpack.c.b16 %v865, %v856
        %v1244 = vpack.c.b16 %v866, %v857
        %v1245 = vpack.c.b16 %v867, %v858
        %v1246 = vpack.c.b16 %v868, %v859
        %v1247 = vpack.c.b16 %v869, %v860
        %v1248 = vpack.c.b16 %v870, %v861
        %v1249 = vpack.c.b16 %v871, %v862
        %v1250 = vpack.c.b16 %v872, %v863
        %v1251 = vpack.c.b16 %v873, %v864
        %v1252 = vpack.c.b16 %v883, %v874
        %v1253 = vpack.c.b16 %v884, %v875
        %v1254 = vpack.c.b16 %v885, %v876
        %v1255 = vpack.c.b16 %v886, %v877
        %v1256 = vpack.c.b16 %v887, %v878
        %v1257 = vpack.c.b16 %v888, %v879
        %v1258 = vpack.c.b16 %v889, %v880
        %v1259 = vpack.c.b16 %v890, %v881
        %v1260 = vpack.c.b16 %v891, %v882
        %v1261 = vpack.c.b16 %v901, %v892
        %v1262 = vpack.c.b16 %v902, %v893
        %v1263 = vpack.c.b16 %v903, %v894
        %v1264 = vpack.c.b16 %v904, %v895
        %v1265 = vpack.c.b16 %v905, %v896
        %v1266 = vpack.c.b16 %v906, %v897
        %v1267 = vpack.c.b16 %v907, %v898
        %v1268 = vpack.c.b16 %v908, %v899
        %v1269 = vpack.c.b16 %v909, %v900
        %v1270 = vpack.c.b16 %v919, %v910
        %v1271 = vpack.c.b16 %v920, %v911
        %v1272 = vpack.c.b16 %v921, %v912
        %v1273 = vpack.c.b16 %v922, %v913
        %v1274 = vpack.c.b16 %v923, %v914
        %v1275 = vpack.c.b16 %v924, %v915
        %v1276 = vpack.c.b16 %v925, %v916
        %v1277 = vpack.c.b16 %v926, %v917
        %v1278 = vpack.c.b16 %v927, %v918
        %v1279 = vpack.c.b16 %v937, %v928
        %v1280 = vpack.c.b16 %v938, %v929
        %v1281 = vpack.c.b16 %v939, %v930
        %v1282 = vpack.c.b16 %v940, %v931
        %v1283 = vpack.c.b16 %v941, %v932
        %v1284 = vpack.c.b16 %v942, %v933
        %v1285 = vpack.c.b16 %v943, %v934
        %v1286 = vpack.c.b16 %v944, %v935
        %v1287 = vpack.c.b16 %v945, %v936
        %v1288 = vpack.c.b16 %v955, %v946
        %v1289 = vpack.c.b16 %v956, %v947
        %v1290 = vpack.c.b16 %v957, %v948
        %v1291 = vpack.c.b16 %v958, %v949
        %v1292 = vpack.c.b16 %v959, %v950
        %v1293 = vpack.c.b16 %v960, %v951
        %v1294 = vpack.c.b16 %v961, %v952
        %v1295 = vpack.c.b16 %v962, %v953
        %v1296 = vpack.c.b16 %v963, %v954
        %v1297 = vpack.c.b16 %v973, %v964
        %v1298 = vpack.c.b16 %v974, %v965
        %v1299 = vpack.c.b16 %v975, %v966
        %v1300 = vpack.c.b16 %v976, %v967
        %v1301 = vpack.c.b16 %v977, %v968
        %v1302 = vpack.c.b16 %v978, %v969
        %v1303 = vpack.c.b16 %v979, %v970
        %v1304 = vpack.c.b16 %v980, %v971
        %v1305 = vpack.c.b16 %v981, %v972
        %v1306 = vpack.c.b16 %v991, %v982
        %v1307 = vpack.c.b16 %v992, %v983
        %v1308 = vpack.c.b16 %v993, %v984
        %v1309 = vpack.c.b16 %v994, %v985
        %v1310 = vpack.c.b16 %v995, %v986
        %v1311 = vpack.c.b16 %v996, %v987
        %v1312 = vpack.c.b16 %v997, %v988
        %v1313 = vpack.c.b16 %v998, %v989
        %v1314 = vpack.c.b16 %v999, %v990
        %v1315 = vpack.c.b16 %v1009, %v1000
        %v1316 = vpack.c.b16 %v1010, %v1001
        %v1317 = vpack.c.b16 %v1011, %v1002
        %v1318 = vpack.c.b16 %v1012, %v1003
        %v1319 = vpack.c.b16 %v1013, %v1004
        %v1320 = vpack.c.b16 %v1014, %v1005
        %v1321 = vpack.c.b16 %v1015, %v1006
        %v1322 = vpack.c.b16 %v1016, %v1007
        %v1323 = vpack.c.b16 %v1017, %v1008
        %v1324 = vpack.c.b16 %v1027, %v1018
        %v1325 = vpack.c.b16 %v1028, %v1019
        %v1326 = vpack.c.b16 %v1029, %v1020
        %v1327 = vpack.c.b16 %v1030, %v1021
        %v1328 = vpack.c.b16 %v1031, %v1022
        %v1329 = vpack.c.b16 %v1032, %v1023
        %v1330 = vpack.c.b16 %v1033, %v1024
        %v1331 = vpack.c.b16 %v1034, %v1025
        %v1332 = vpack.c.b16 %v1035, %v1026
        %v1333 = vpack.c.b16 %v1045, %v1036
        %v1334 = vpack.c.b16 %v1046, %v1037
        %v1335 = vpack.c.b16 %v1047, %v1038
        %v1336 = vpack.c.b16 %v1048, %v1039
        %v1337 = vpack.c.b16 %v1049, %v1040
        %v1338 = vpack.c.b16 %v1050, %v1041
        %v1339 = vpack.c.b16 %v1051, %v1042
        %v1340 = vpack.c.b16 %v1052, %v1043
        %v1341 = vpack.c.b16 %v1053, %v1044
        %v1342 = vpack.c.b16 %v1063, %v1054
        %v1343 = vpack.c.b16 %v1064, %v1055
        %v1344 = vpack.c.b16 %v1065, %v1056
        %v1345 = vpack.c.b16 %v1066, %v1057
        %v1346 = vpack.c.b16 %v1067, %v1058
        %v1347 = vpack.c.b16 %v1068, %v1059
        %v1348 = vpack.c.b16 %v1069, %v1060
        %v1349 = vpack.c.b16 %v1070, %v1061
        %v1350 = vpack.c.b16 %v1071, %v1062
        %v1351 = vpack.c.b16 %v1081, %v1072
        %v1352 = vpack.c.b16 %v1082, %v1073
        %v1353 = vpack.c.b16 %v1083, %v1074
        %v1354 = vpack.c.b16 %v1084, %v1075
        %v1355 = vpack.c.b16 %v1085, %v1076
        %v1356 = vpack.c.b16 %v1086, %v1077
        %v1357 = vpack.c.b16 %v1087, %v1078
        %v1358 = vpack.c.b16 %v1088, %v1079
        %v1359 = vpack.c.b16 %v1089, %v1080
        %v1360 = vpack.c.b16 %v1099, %v1090
        %v1361 = vpack.c.b16 %v1100, %v1091
        %v1362 = vpack.c.b16 %v1101, %v1092
        %v1363 = vpack.c.b16 %v1102, %v1093
        %v1364 = vpack.c.b16 %v1103, %v1094
        %v1365 = vpack.c.b16 %v1104, %v1095
        %v1366 = vpack.c.b16 %v1105, %v1096
        %v1367 = vpack.c.b16 %v1106, %v1097
        %v1368 = vpack.c.b16 %v1107, %v1098
        %v1369 = vpack.c.b16 %v1117, %v1108
        %v1370 = vpack.c.b16 %v1118, %v1109
        %v1371 = vpack.c.b16 %v1119, %v1110
        %v1372 = vpack.c.b16 %v1120, %v1111
        %v1373 = vpack.c.b16 %v1121, %v1112
        %v1374 = vpack.c.b16 %v1122, %v1113
        %v1375 = vpack.c.b16 %v1123, %v1114
        %v1376 = vpack.c.b16 %v1124, %v1115
        %v1377 = vpack.c.b16 %v1125, %v1116
        %v1378 = vpack.c.b16 %v1135, %v1126
        %v1379 = vpack.c.b16 %v1136, %v1127
        %v1380 = vpack.c.b16 %v1137, %v1128
        %v1381 = vpack.c.b16 %v1138, %v1129
        %v1382 = vpack.c.b16 %v1139, %v1130
        %v1383 = vpack.c.b16 %v1140, %v1131
        %v1384 = vpack.c.b16 %v1141, %v1132
        %v1385 = vpack.c.b16 %v1142, %v1133
        %v1386 = vpack.c.b16 %v1143, %v1134
        %v1387 = vpack.c.b16 %v1153, %v1144
        %v1388 = vpack.c.b16 %v1154, %v1145
        %v1389 = vpack.c.b16 %v1155, %v1146
        %v1390 = vpack.c.b16 %v1156, %v1147
        %v1391 = vpack.c.b16 %v1157, %v1148
        %v1392 = vpack.c.b16 %v1158, %v1149
        %v1393 = vpack.c.b16 %v1159, %v1150
        %v1394 = vpack.c.b16 %v1160, %v1151
        %v1395 = vpack.c.b16 %v1161, %v1152
        %v1396 = vpack.c.b16 %v1171, %v1162
        %v1397 = vpack.c.b16 %v1172, %v1163
        %v1398 = vpack.c.b16 %v1173, %v1164
        %v1399 = vpack.c.b16 %v1174, %v1165
        %v1400 = vpack.c.b16 %v1175, %v1166
        %v1401 = vpack.c.b16 %v1176, %v1167
        %v1402 = vpack.c.b16 %v1177, %v1168
        %v1403 = vpack.c.b16 %v1178, %v1169
        %v1404 = vpack.c.b16 %v1179, %v1170
        %v1405 = vpack.c.b16 %v1189, %v1180
        %v1406 = vpack.c.b16 %v1190, %v1181
        %v1407 = vpack.c.b16 %v1191, %v1182
        %v1408 = vpack.c.b16 %v1192, %v1183
        %v1409 = vpack.c.b16 %v1193, %v1184
        %v1410 = vpack.c.b16 %v1194, %v1185
        %v1411 = vpack.c.b16 %v1195, %v1186
        %v1412 = vpack.c.b16 %v1196, %v1187
        %v1413 = vpack.c.b16 %v1197, %v1188
        %1630 = vmatpush.bf16.msra.mxu0 %v1261
        %1631 = vmatpush.bf16.msra.mxu0 %v1252
        %1632 = vmatpush.bf16.msra.mxu0 %v1243
        %1633 = vmatpush.bf16.msra.mxu0 %v1234
        %1634 = vmatpush.bf16.msra.mxu0 %v1225
        %1635 = vmatpush.bf16.msra.mxu0 %v1216
        %1636 = vmatpush.bf16.msra.mxu0 %v1207
        %1637 = vmatpush.bf16.msra.mxu0 %v1198
        %1638 = vmatmul.bf16.gmra.mxu0 %v520
        %v1639 = vpop.f32.mrf.mxu0
        %v1640 = vadd.f32 0.0, %v1639
        %v1641 = vpop.f32.mrf.mxu0
        %v1642 = vadd.f32 0.0, %v1641
        %1643 = vdwg.mxu0
        %1644 = vmatpush.bf16.msra.mxu0 %v1333
        %1645 = vmatpush.bf16.msra.mxu0 %v1324
        %1646 = vmatpush.bf16.msra.mxu0 %v1315
        %1647 = vmatpush.bf16.msra.mxu0 %v1306
        %1648 = vmatpush.bf16.msra.mxu0 %v1297
        %1649 = vmatpush.bf16.msra.mxu0 %v1288
        %1650 = vmatpush.bf16.msra.mxu0 %v1279
        %1651 = vmatpush.bf16.msra.mxu0 %v1270
        %1652 = vmatmul.bf16.gmra.mxu0 %v521
        %v1653 = vpop.f32.mrf.mxu0
        %v1654 = vadd.f32 %v1640, %v1653
        %v1655 = vpop.f32.mrf.mxu0
        %v1656 = vadd.f32 %v1642, %v1655
        %1657 = vdwg.mxu0
        %1658 = vmatpush.bf16.msra.mxu0 %v1405
        %1659 = vmatpush.bf16.msra.mxu0 %v1396
        %1660 = vmatpush.bf16.msra.mxu0 %v1387
        %1661 = vmatpush.bf16.msra.mxu0 %v1378
        %1662 = vmatpush.bf16.msra.mxu0 %v1369
        %1663 = vmatpush.bf16.msra.mxu0 %v1360
        %1664 = vmatpush.bf16.msra.mxu0 %v1351
        %1665 = vmatpush.bf16.msra.mxu0 %v1342
        %1666 = vmatmul.bf16.gmra.mxu0 %v522
        %v1667 = vpop.f32.mrf.mxu0
        %v1668 = vadd.f32 %v1654, %v1667
        %v1669 = vpop.f32.mrf.mxu0
        %v1670 = vadd.f32 %v1656, %v1669
        %1671 = vdwg.mxu0
        %1672 = vmatpush.bf16.msra.mxu0 %v1262
        %1673 = vmatpush.bf16.msra.mxu0 %v1253
        %1674 = vmatpush.bf16.msra.mxu0 %v1244
        %1675 = vmatpush.bf16.msra.mxu0 %v1235
        %1676 = vmatpush.bf16.msra.mxu0 %v1226
        %1677 = vmatpush.bf16.msra.mxu0 %v1217
        %1678 = vmatpush.bf16.msra.mxu0 %v1208
        %1679 = vmatpush.bf16.msra.mxu0 %v1199
        %1680 = vmatmul.bf16.gmra.mxu0 %v520
        %v1681 = vpop.f32.mrf.mxu0
        %v1682 = vadd.f32 0.0, %v1681
        %v1683 = vpop.f32.mrf.mxu0
        %v1684 = vadd.f32 0.0, %v1683
        %1685 = vdwg.mxu0
        %1686 = vmatpush.bf16.msra.mxu0 %v1334
        %1687 = vmatpush.bf16.msra.mxu0 %v1325
        %1688 = vmatpush.bf16.msra.mxu0 %v1316
        %1689 = vmatpush.bf16.msra.mxu0 %v1307
        %1690 = vmatpush.bf16.msra.mxu0 %v1298
        %1691 = vmatpush.bf16.msra.mxu0 %v1289
        %1692 = vmatpush.bf16.msra.mxu0 %v1280
        %1693 = vmatpush.bf16.msra.mxu0 %v1271
        %1694 = vmatmul.bf16.gmra.mxu0 %v521
        %v1695 = vpop.f32.mrf.mxu0
        %v1696 = vadd.f32 %v1682, %v1695
        %v1697 = vpop.f32.mrf.mxu0
        %v1698 = vadd.f32 %v1684, %v1697
        %1699 = vdwg.mxu0
        %1700 = vmatpush.bf16.msra.mxu0 %v1406
        %1701 = vmatpush.bf16.msra.mxu0 %v1397
        %1702 = vmatpush.bf16.msra.mxu0 %v1388
        %1703 = vmatpush.bf16.msra.mxu0 %v1379
        %1704 = vmatpush.bf16.msra.mxu0 %v1370
        %1705 = vmatpush.bf16.msra.mxu0 %v1361
        %1706 = vmatpush.bf16.msra.mxu0 %v1352
        %1707 = vmatpush.bf16.msra.mxu0 %v1343
        %1708 = vmatmul.bf16.gmra.mxu0 %v522
        %v1709 = vpop.f32.mrf.mxu0
        %v1710 = vadd.f32 %v1696, %v1709
        %v1711 = vpop.f32.mrf.mxu0
        %v1712 = vadd.f32 %v1698, %v1711
        %1713 = vdwg.mxu0
        %1714 = vmatpush.bf16.msra.mxu0 %v1263
        %1715 = vmatpush.bf16.msra.mxu0 %v1254
        %1716 = vmatpush.bf16.msra.mxu0 %v1245
        %1717 = vmatpush.bf16.msra.mxu0 %v1236
        %1718 = vmatpush.bf16.msra.mxu0 %v1227
        %1719 = vmatpush.bf16.msra.mxu0 %v1218
        %1720 = vmatpush.bf16.msra.mxu0 %v1209
        %1721 = vmatpush.bf16.msra.mxu0 %v1200
        %1722 = vmatmul.bf16.gmra.mxu0 %v520
        %v1723 = vpop.f32.mrf.mxu0
        %v1724 = vadd.f32 0.0, %v1723
        %v1725 = vpop.f32.mrf.mxu0
        %v1726 = vadd.f32 0.0, %v1725
        %1727 = vdwg.mxu0
        %1728 = vmatpush.bf16.msra.mxu0 %v1335
        %1729 = vmatpush.bf16.msra.mxu0 %v1326
        %1730 = vmatpush.bf16.msra.mxu0 %v1317
        %1731 = vmatpush.bf16.msra.mxu0 %v1308
        %1732 = vmatpush.bf16.msra.mxu0 %v1299
        %1733 = vmatpush.bf16.msra.mxu0 %v1290
        %1734 = vmatpush.bf16.msra.mxu0 %v1281
        %1735 = vmatpush.bf16.msra.mxu0 %v1272
        %1736 = vmatmul.bf16.gmra.mxu0 %v521
        %v1737 = vpop.f32.mrf.mxu0
        %v1738 = vadd.f32 %v1724, %v1737
        %v1739 = vpop.f32.mrf.mxu0
        %v1740 = vadd.f32 %v1726, %v1739
        %1741 = vdwg.mxu0
        %1742 = vmatpush.bf16.msra.mxu0 %v1407
        %1743 = vmatpush.bf16.msra.mxu0 %v1398
        %1744 = vmatpush.bf16.msra.mxu0 %v1389
        %1745 = vmatpush.bf16.msra.mxu0 %v1380
        %1746 = vmatpush.bf16.msra.mxu0 %v1371
        %1747 = vmatpush.bf16.msra.mxu0 %v1362
        %1748 = vmatpush.bf16.msra.mxu0 %v1353
        %1749 = vmatpush.bf16.msra.mxu0 %v1344
        %1750 = vmatmul.bf16.gmra.mxu0 %v522
        %v1751 = vpop.f32.mrf.mxu0
        %v1752 = vadd.f32 %v1738, %v1751
        %v1753 = vpop.f32.mrf.mxu0
        %v1754 = vadd.f32 %v1740, %v1753
        %1755 = vdwg.mxu0
        %1756 = vmatpush.bf16.msra.mxu0 %v1264
        %1757 = vmatpush.bf16.msra.mxu0 %v1255
        %1758 = vmatpush.bf16.msra.mxu0 %v1246
        %1759 = vmatpush.bf16.msra.mxu0 %v1237
        %1760 = vmatpush.bf16.msra.mxu0 %v1228
        %1761 = vmatpush.bf16.msra.mxu0 %v1219
        %1762 = vmatpush.bf16.msra.mxu0 %v1210
        %1763 = vmatpush.bf16.msra.mxu0 %v1201
        %1764 = vmatmul.bf16.gmra.mxu0 %v520
        %v1765 = vpop.f32.mrf.mxu0
        %v1766 = vadd.f32 0.0, %v1765
        %v1767 = vpop.f32.mrf.mxu0
        %v1768 = vadd.f32 0.0, %v1767
        %1769 = vdwg.mxu0
        %1770 = vmatpush.bf16.msra.mxu0 %v1336
        %1771 = vmatpush.bf16.msra.mxu0 %v1327
        %1772 = vmatpush.bf16.msra.mxu0 %v1318
        %1773 = vmatpush.bf16.msra.mxu0 %v1309
        %1774 = vmatpush.bf16.msra.mxu0 %v1300
        %1775 = vmatpush.bf16.msra.mxu0 %v1291
        %1776 = vmatpush.bf16.msra.mxu0 %v1282
        %1777 = vmatpush.bf16.msra.mxu0 %v1273
        %1778 = vmatmul.bf16.gmra.mxu0 %v521
        %v1779 = vpop.f32.mrf.mxu0
        %v1780 = vadd.f32 %v1766, %v1779
        %v1781 = vpop.f32.mrf.mxu0
        %v1782 = vadd.f32 %v1768, %v1781
        %1783 = vdwg.mxu0
        %1784 = vmatpush.bf16.msra.mxu0 %v1408
        %1785 = vmatpush.bf16.msra.mxu0 %v1399
        %1786 = vmatpush.bf16.msra.mxu0 %v1390
        %1787 = vmatpush.bf16.msra.mxu0 %v1381
        %1788 = vmatpush.bf16.msra.mxu0 %v1372
        %1789 = vmatpush.bf16.msra.mxu0 %v1363
        %1790 = vmatpush.bf16.msra.mxu0 %v1354
        %1791 = vmatpush.bf16.msra.mxu0 %v1345
        %1792 = vmatmul.bf16.gmra.mxu0 %v522
        %v1793 = vpop.f32.mrf.mxu0
        %v1794 = vadd.f32 %v1780, %v1793
        %v1795 = vpop.f32.mrf.mxu0
        %v1796 = vadd.f32 %v1782, %v1795
        %1797 = vdwg.mxu0
        %1798 = vmatpush.bf16.msra.mxu0 %v1265
        %1799 = vmatpush.bf16.msra.mxu0 %v1256
        %1800 = vmatpush.bf16.msra.mxu0 %v1247
        %1801 = vmatpush.bf16.msra.mxu0 %v1238
        %1802 = vmatpush.bf16.msra.mxu0 %v1229
        %1803 = vmatpush.bf16.msra.mxu0 %v1220
        %1804 = vmatpush.bf16.msra.mxu0 %v1211
        %1805 = vmatpush.bf16.msra.mxu0 %v1202
        %1806 = vmatmul.bf16.gmra.mxu0 %v520
        %v1807 = vpop.f32.mrf.mxu0
        %v1808 = vadd.f32 0.0, %v1807
        %v1809 = vpop.f32.mrf.mxu0
        %v1810 = vadd.f32 0.0, %v1809
        %1811 = vdwg.mxu0
        %1812 = vmatpush.bf16.msra.mxu0 %v1337
        %1813 = vmatpush.bf16.msra.mxu0 %v1328
        %1814 = vmatpush.bf16.msra.mxu0 %v1319
        %1815 = vmatpush.bf16.msra.mxu0 %v1310
        %1816 = vmatpush.bf16.msra.mxu0 %v1301
        %1817 = vmatpush.bf16.msra.mxu0 %v1292
        %1818 = vmatpush.bf16.msra.mxu0 %v1283
        %1819 = vmatpush.bf16.msra.mxu0 %v1274
        %1820 = vmatmul.bf16.gmra.mxu0 %v521
        %v1821 = vpop.f32.mrf.mxu0
        %v1822 = vadd.f32 %v1808, %v1821
        %v1823 = vpop.f32.mrf.mxu0
        %v1824 = vadd.f32 %v1810, %v1823
        %1825 = vdwg.mxu0
        %1826 = vmatpush.bf16.msra.mxu0 %v1409
        %1827 = vmatpush.bf16.msra.mxu0 %v1400
        %1828 = vmatpush.bf16.msra.mxu0 %v1391
        %1829 = vmatpush.bf16.msra.mxu0 %v1382
        %1830 = vmatpush.bf16.msra.mxu0 %v1373
        %1831 = vmatpush.bf16.msra.mxu0 %v1364
        %1832 = vmatpush.bf16.msra.mxu0 %v1355
        %1833 = vmatpush.bf16.msra.mxu0 %v1346
        %1834 = vmatmul.bf16.gmra.mxu0 %v522
        %v1835 = vpop.f32.mrf.mxu0
        %v1836 = vadd.f32 %v1822, %v1835
        %v1837 = vpop.f32.mrf.mxu0
        %v1838 = vadd.f32 %v1824, %v1837
        %1839 = vdwg.mxu0
        %1840 = vmatpush.bf16.msra.mxu0 %v1266
        %1841 = vmatpush.bf16.msra.mxu0 %v1257
        %1842 = vmatpush.bf16.msra.mxu0 %v1248
        %1843 = vmatpush.bf16.msra.mxu0 %v1239
        %1844 = vmatpush.bf16.msra.mxu0 %v1230
        %1845 = vmatpush.bf16.msra.mxu0 %v1221
        %1846 = vmatpush.bf16.msra.mxu0 %v1212
        %1847 = vmatpush.bf16.msra.mxu0 %v1203
        %1848 = vmatmul.bf16.gmra.mxu0 %v520
        %v1849 = vpop.f32.mrf.mxu0
        %v1850 = vadd.f32 0.0, %v1849
        %v1851 = vpop.f32.mrf.mxu0
        %v1852 = vadd.f32 0.0, %v1851
        %1853 = vdwg.mxu0
        %1854 = vmatpush.bf16.msra.mxu0 %v1338
        %1855 = vmatpush.bf16.msra.mxu0 %v1329
        %1856 = vmatpush.bf16.msra.mxu0 %v1320
        %1857 = vmatpush.bf16.msra.mxu0 %v1311
        %1858 = vmatpush.bf16.msra.mxu0 %v1302
        %1859 = vmatpush.bf16.msra.mxu0 %v1293
        %1860 = vmatpush.bf16.msra.mxu0 %v1284
        %1861 = vmatpush.bf16.msra.mxu0 %v1275
        %1862 = vmatmul.bf16.gmra.mxu0 %v521
        %v1863 = vpop.f32.mrf.mxu0
        %v1864 = vadd.f32 %v1850, %v1863
        %v1865 = vpop.f32.mrf.mxu0
        %v1866 = vadd.f32 %v1852, %v1865
        %1867 = vdwg.mxu0
        %1868 = vmatpush.bf16.msra.mxu0 %v1410
        %1869 = vmatpush.bf16.msra.mxu0 %v1401
        %1870 = vmatpush.bf16.msra.mxu0 %v1392
        %1871 = vmatpush.bf16.msra.mxu0 %v1383
        %1872 = vmatpush.bf16.msra.mxu0 %v1374
        %1873 = vmatpush.bf16.msra.mxu0 %v1365
        %1874 = vmatpush.bf16.msra.mxu0 %v1356
        %1875 = vmatpush.bf16.msra.mxu0 %v1347
        %1876 = vmatmul.bf16.gmra.mxu0 %v522
        %v1877 = vpop.f32.mrf.mxu0
        %v1878 = vadd.f32 %v1864, %v1877
        %v1879 = vpop.f32.mrf.mxu0
        %v1880 = vadd.f32 %v1866, %v1879
        %1881 = vdwg.mxu0
        %1882 = vmatpush.bf16.msra.mxu0 %v1267
        %1883 = vmatpush.bf16.msra.mxu0 %v1258
        %1884 = vmatpush.bf16.msra.mxu0 %v1249
        %1885 = vmatpush.bf16.msra.mxu0 %v1240
        %1886 = vmatpush.bf16.msra.mxu0 %v1231
        %1887 = vmatpush.bf16.msra.mxu0 %v1222
        %1888 = vmatpush.bf16.msra.mxu0 %v1213
        %1889 = vmatpush.bf16.msra.mxu0 %v1204
        %1890 = vmatmul.bf16.gmra.mxu0 %v520
        %v1891 = vpop.f32.mrf.mxu0
        %v1892 = vadd.f32 0.0, %v1891
        %v1893 = vpop.f32.mrf.mxu0
        %v1894 = vadd.f32 0.0, %v1893
        %1895 = vdwg.mxu0
        %1896 = vmatpush.bf16.msra.mxu0 %v1339
        %1897 = vmatpush.bf16.msra.mxu0 %v1330
        %1898 = vmatpush.bf16.msra.mxu0 %v1321
        %1899 = vmatpush.bf16.msra.mxu0 %v1312
        %1900 = vmatpush.bf16.msra.mxu0 %v1303
        %1901 = vmatpush.bf16.msra.mxu0 %v1294
        %1902 = vmatpush.bf16.msra.mxu0 %v1285
        %1903 = vmatpush.bf16.msra.mxu0 %v1276
        %1904 = vmatmul.bf16.gmra.mxu0 %v521
        %v1905 = vpop.f32.mrf.mxu0
        %v1906 = vadd.f32 %v1892, %v1905
        %v1907 = vpop.f32.mrf.mxu0
        %v1908 = vadd.f32 %v1894, %v1907
        %1909 = vdwg.mxu0
        %1910 = vmatpush.bf16.msra.mxu0 %v1411
        %1911 = vmatpush.bf16.msra.mxu0 %v1402
        %1912 = vmatpush.bf16.msra.mxu0 %v1393
        %1913 = vmatpush.bf16.msra.mxu0 %v1384
        %1914 = vmatpush.bf16.msra.mxu0 %v1375
        %1915 = vmatpush.bf16.msra.mxu0 %v1366
        %1916 = vmatpush.bf16.msra.mxu0 %v1357
        %1917 = vmatpush.bf16.msra.mxu0 %v1348
        %1918 = vmatmul.bf16.gmra.mxu0 %v522
        %v1919 = vpop.f32.mrf.mxu0
        %v1920 = vadd.f32 %v1906, %v1919
        %v1921 = vpop.f32.mrf.mxu0
        %v1922 = vadd.f32 %v1908, %v1921
        %1923 = vdwg.mxu0
        %1924 = vmatpush.bf16.msra.mxu0 %v1268
        %1925 = vmatpush.bf16.msra.mxu0 %v1259
        %1926 = vmatpush.bf16.msra.mxu0 %v1250
        %1927 = vmatpush.bf16.msra.mxu0 %v1241
        %1928 = vmatpush.bf16.msra.mxu0 %v1232
        %1929 = vmatpush.bf16.msra.mxu0 %v1223
        %1930 = vmatpush.bf16.msra.mxu0 %v1214
        %1931 = vmatpush.bf16.msra.mxu0 %v1205
        %1932 = vmatmul.bf16.gmra.mxu0 %v520
        %v1933 = vpop.f32.mrf.mxu0
        %v1934 = vadd.f32 0.0, %v1933
        %v1935 = vpop.f32.mrf.mxu0
        %v1936 = vadd.f32 0.0, %v1935
        %1937 = vdwg.mxu0
        %1938 = vmatpush.bf16.msra.mxu0 %v1340
        %1939 = vmatpush.bf16.msra.mxu0 %v1331
        %1940 = vmatpush.bf16.msra.mxu0 %v1322
        %1941 = vmatpush.bf16.msra.mxu0 %v1313
        %1942 = vmatpush.bf16.msra.mxu0 %v1304
        %1943 = vmatpush.bf16.msra.mxu0 %v1295
        %1944 = vmatpush.bf16.msra.mxu0 %v1286
        %1945 = vmatpush.bf16.msra.mxu0 %v1277
        %1946 = vmatmul.bf16.gmra.mxu0 %v521
        %v1947 = vpop.f32.mrf.mxu0
        %v1948 = vadd.f32 %v1934, %v1947
        %v1949 = vpop.f32.mrf.mxu0
        %v1950 = vadd.f32 %v1936, %v1949
        %1951 = vdwg.mxu0
        %1952 = vmatpush.bf16.msra.mxu0 %v1412
        %1953 = vmatpush.bf16.msra.mxu0 %v1403
        %1954 = vmatpush.bf16.msra.mxu0 %v1394
        %1955 = vmatpush.bf16.msra.mxu0 %v1385
        %1956 = vmatpush.bf16.msra.mxu0 %v1376
        %1957 = vmatpush.bf16.msra.mxu0 %v1367
        %1958 = vmatpush.bf16.msra.mxu0 %v1358
        %1959 = vmatpush.bf16.msra.mxu0 %v1349
        %1960 = vmatmul.bf16.gmra.mxu0 %v522
        %v1961 = vpop.f32.mrf.mxu0
        %v1962 = vadd.f32 %v1948, %v1961
        %v1963 = vpop.f32.mrf.mxu0
        %v1964 = vadd.f32 %v1950, %v1963
        %1965 = vdwg.mxu0
        %1966 = vmatpush.bf16.msra.mxu0 %v1269
        %1967 = vmatpush.bf16.msra.mxu0 %v1260
        %1968 = vmatpush.bf16.msra.mxu0 %v1251
        %1969 = vmatpush.bf16.msra.mxu0 %v1242
        %1970 = vmatpush.bf16.msra.mxu0 %v1233
        %1971 = vmatpush.bf16.msra.mxu0 %v1224
        %1972 = vmatpush.bf16.msra.mxu0 %v1215
        %1973 = vmatpush.bf16.msra.mxu0 %v1206
        %1974 = vmatmul.bf16.gmra.mxu0 %v520
        %v1975 = vpop.f32.mrf.mxu0
        %v1976 = vadd.f32 0.0, %v1975
        %v1977 = vpop.f32.mrf.mxu0
        %v1978 = vadd.f32 0.0, %v1977
        %1979 = vdwg.mxu0
        %1980 = vmatpush.bf16.msra.mxu0 %v1341
        %1981 = vmatpush.bf16.msra.mxu0 %v1332
        %1982 = vmatpush.bf16.msra.mxu0 %v1323
        %1983 = vmatpush.bf16.msra.mxu0 %v1314
        %1984 = vmatpush.bf16.msra.mxu0 %v1305
        %1985 = vmatpush.bf16.msra.mxu0 %v1296
        %1986 = vmatpush.bf16.msra.mxu0 %v1287
        %1987 = vmatpush.bf16.msra.mxu0 %v1278
        %1988 = vmatmul.bf16.gmra.mxu0 %v521
        %v1989 = vpop.f32.mrf.mxu0
        %v1990 = vadd.f32 %v1976, %v1989
        %v1991 = vpop.f32.mrf.mxu0
        %v1992 = vadd.f32 %v1978, %v1991
        %1993 = vdwg.mxu0
        %1994 = vmatpush.bf16.msra.mxu0 %v1413
        %1995 = vmatpush.bf16.msra.mxu0 %v1404
        %1996 = vmatpush.bf16.msra.mxu0 %v1395
        %1997 = vmatpush.bf16.msra.mxu0 %v1386
        %1998 = vmatpush.bf16.msra.mxu0 %v1377
        %1999 = vmatpush.bf16.msra.mxu0 %v1368
        %2000 = vmatpush.bf16.msra.mxu0 %v1359
        %2001 = vmatpush.bf16.msra.mxu0 %v1350
        %2002 = vmatmul.bf16.gmra.mxu0 %v522
        %v2003 = vpop.f32.mrf.mxu0
        %v2004 = vadd.f32 %v1990, %v2003
        %v2005 = vpop.f32.mrf.mxu0
        %v2006 = vadd.f32 %v1992, %v2005
        %2007 = vdwg.mxu0
        %v2008 = vlaneseq
        %v2009 = vshrl.u32 %v2008, 7
        %v2010 = vadd.s32 %v2009, 8
        %v2011 = vlaneseq
        %v2012 = vand.u32 %v2011, 127
        %vm2013 = vcmp.ge.s32.totalorder %v2009, %v2012
        %vm2014 = vcmp.ge.s32.totalorder %v2010, %v2012
        %vm2015 = vcmask 785408
        %v2017 = vsel %vm2015, %v1668, 0
        %v2020 = vsel %vm2015, %v1670, 0
        %v2023 = vsel %vm2015, %v1794, 0
        %v2026 = vsel %vm2015, %v1796, 0
        %2028 = vmatpush.xpose.msra.mxu0 0.0
        %2029 = vmatpush.xpose.msra.mxu0 0.0
        %2030 = vmatpush.xpose.msra.mxu0 0.0
        %2031 = vmatpush.xpose.msra.mxu0 0.0
        %2032 = vmatpush.xpose.msra.mxu0 0.0
        %2033 = vmatpush.xpose.msra.mxu0 0.0
        %2034 = vmatpush.xpose.msra.mxu0 0.0
        %2035 = vmatpush.xpose.msra.mxu0 0.0
        %2036 = vmatpush.xpose.msra.mxu0 0.0
        %2037 = vmatpush.xpose.msra.mxu0 0.0
        %2038 = vmatpush.xpose.msra.mxu0 0.0
        %2039 = vmatpush.xpose.msra.mxu0 0.0
        %2040 = vmatpush.xpose.msra.mxu0 0.0
        %2041 = vmatpush.xpose.msra.mxu0 0.0
        %2042 = vmatpush.xpose.msra.mxu0 %v2026
        %2043 = vmatpush.xpose.msra.mxu0 %v2023
        %2044 = vmatmul.f32.gmra.mxu0 %v2017
        %v2045 = vpop.f32.mrf.mxu0
        %v2046 = vadd.f32 0.0, %v2045
        %2047 = vmatmul.f32.gmra.mxu0 %v2020
        %v2048 = vpop.f32.mrf.mxu0
        %v2049 = vadd.f32 0.0, %v2048
        %2050 = vdwg.mxu0
        %v2051 = vmul.f32 %v2046, 0.10206208
        %v2052 = vmul.f32 %v2049, 0.10206208
        %v2053 = vsel %vm2013, %v2051, -inf
        %v2054 = vsel %vm2014, %v2052, -inf
        %vm2055 = vcmask 130048
        %v2056 = vsel %vm2055, %v2053, -inf
        %2057 = vmax.xlane.f32.xlu0 %v2056
        %v2058 = vpop.xlane.xlu0 %2057
        %v2059 = vsel %vm2055, %v2054, -inf
        %2060 = vmax.xlane.f32.xlu0 %v2059
        %v2061 = vpop.xlane.xlu0 %2060
        %v2062 = vsub.f32 %v2053, %v2058
        %v2063 = vsub.f32 %v2054, %v2061
        %v2064 = vmul.f32 %v2062, 1.442695
        %v2065 = vpow.pop %v2064
        %v2066 = vmul.f32 %v2063, 1.442695
        %v2067 = vpow.pop %v2066
        %v2068 = vsel %vm2055, %v2065, 0.0
        %2069 = vadd.xlane.f32.xlu0 %v2068
        %v2070 = vpop.xlane.xlu0 %2069
        %v2071 = vsel %vm2055, %v2067, 0.0
        %2072 = vadd.xlane.f32.xlu0 %v2071
        %v2073 = vpop.xlane.xlu0 %2072
        %v2075 = vsel %vm2055, %v2065, 0
        %v2078 = vsel %vm2055, %v2067, 0
        %2080 = vmatpush.msra.mxu0 0.0
        %2081 = vmatpush.msra.mxu0 0.0
        %2082 = vmatpush.msra.mxu0 0.0
        %2083 = vmatpush.msra.mxu0 0.0
        %2084 = vmatpush.msra.mxu0 0.0
        %2085 = vmatpush.msra.mxu0 0.0
        %2086 = vmatpush.msra.mxu0 0.0
        %2087 = vmatpush.msra.mxu0 0.0
        %2088 = vmatpush.msra.mxu0 0.0
        %2089 = vmatpush.msra.mxu0 0.0
        %2090 = vmatpush.msra.mxu0 0.0
        %2091 = vmatpush.msra.mxu0 0.0
        %2092 = vmatpush.msra.mxu0 0.0
        %2093 = vmatpush.msra.mxu0 0.0
        %2094 = vmatpush.msra.mxu0 %v1922
        %2095 = vmatpush.msra.mxu0 %v1920
        %2096 = vmatmul.f32.gmra.mxu0 %v2075
        %v2097 = vpop.f32.mrf.mxu0
        %v2098 = vadd.f32 0.0, %v2097
        %2099 = vmatmul.f32.gmra.mxu0 %v2078
        %v2100 = vpop.f32.mrf.mxu0
        %v2101 = vadd.f32 0.0, %v2100
        %2102 = vdwg.mxu0
        %v2103 = vrcp.pop %v2070
        %v2104 = vrcp.pop %v2073
        %v2105 = vmul.f32 %v2098, %v2103
        %v2106 = vmul.f32 %v2101, %v2104
        %2109 = vrot.lane.b32.xlu0 %v1668, 32
        %v2110 = vpop.permute.xlu0 %2109
        %2111 = vrot.lane.b32.xlu0 %v1710, 32
        %v2112 = vpop.permute.xlu0 %2111
        %2113 = vrot.lane.b32.xlu0 %v1670, 32
        %v2114 = vpop.permute.xlu0 %2113
        %2115 = vrot.lane.b32.xlu0 %v1712, 32
        %v2116 = vpop.permute.xlu0 %2115
        %vm2117 = vcmask 261120
        %v2118 = vsel %vm2117, %v2110, %v2112
        %v2119 = vsel %vm2117, %v2114, %v2116
        %2122 = vrot.lane.b32.xlu0 %v1794, 32
        %v2123 = vpop.permute.xlu0 %2122
        %2124 = vrot.lane.b32.xlu0 %v1836, 32
        %v2125 = vpop.permute.xlu0 %2124
        %2126 = vrot.lane.b32.xlu0 %v1796, 32
        %v2127 = vpop.permute.xlu0 %2126
        %2128 = vrot.lane.b32.xlu0 %v1838, 32
        %v2129 = vpop.permute.xlu0 %2128
        %v2130 = vsel %vm2117, %v2123, %v2125
        %v2131 = vsel %vm2117, %v2127, %v2129
        %v2132 = vsel %vm2015, %v2118, 0
        %v2134 = vsel %vm2015, %v2119, 0
        %v2136 = vsel %vm2015, %v2130, 0
        %v2138 = vsel %vm2015, %v2131, 0
        %2140 = vmatpush.xpose.msra.mxu0 0.0
        %2141 = vmatpush.xpose.msra.mxu0 0.0
        %2142 = vmatpush.xpose.msra.mxu0 0.0
        %2143 = vmatpush.xpose.msra.mxu0 0.0
        %2144 = vmatpush.xpose.msra.mxu0 0.0
        %2145 = vmatpush.xpose.msra.mxu0 0.0
        %2146 = vmatpush.xpose.msra.mxu0 0.0
        %2147 = vmatpush.xpose.msra.mxu0 0.0
        %2148 = vmatpush.xpose.msra.mxu0 0.0
        %2149 = vmatpush.xpose.msra.mxu0 0.0
        %2150 = vmatpush.xpose.msra.mxu0 0.0
        %2151 = vmatpush.xpose.msra.mxu0 0.0
        %2152 = vmatpush.xpose.msra.mxu0 0.0
        %2153 = vmatpush.xpose.msra.mxu0 0.0
        %2154 = vmatpush.xpose.msra.mxu0 %v2138
        %2155 = vmatpush.xpose.msra.mxu0 %v2136
        %2156 = vmatmul.f32.gmra.mxu0 %v2132
        %v2157 = vpop.f32.mrf.mxu0
        %v2158 = vadd.f32 0.0, %v2157
        %2159 = vmatmul.f32.gmra.mxu0 %v2134
        %v2160 = vpop.f32.mrf.mxu0
        %v2161 = vadd.f32 0.0, %v2160
        %2162 = vdwg.mxu0
        %v2163 = vmul.f32 %v2158, 0.10206208
        %v2164 = vmul.f32 %v2161, 0.10206208
        %v2165 = vsel %vm2013, %v2163, -inf
        %v2166 = vsel %vm2014, %v2164, -inf
        %v2167 = vsel %vm2055, %v2165, -inf
        %2168 = vmax.xlane.f32.xlu0 %v2167
        %v2169 = vpop.xlane.xlu0 %2168
        %v2170 = vsel %vm2055, %v2166, -inf
        %2171 = vmax.xlane.f32.xlu0 %v2170
        %v2172 = vpop.xlane.xlu0 %2171
        %v2173 = vsub.f32 %v2165, %v2169
        %v2174 = vsub.f32 %v2166, %v2172
        %v2175 = vmul.f32 %v2173, 1.442695
        %v2176 = vpow.pop %v2175
        %v2177 = vmul.f32 %v2174, 1.442695
        %v2178 = vpow.pop %v2177
        %v2179 = vsel %vm2055, %v2176, 0.0
        %2180 = vadd.xlane.f32.xlu0 %v2179
        %v2181 = vpop.xlane.xlu0 %2180
        %v2182 = vsel %vm2055, %v2178, 0.0
        %2183 = vadd.xlane.f32.xlu0 %v2182
        %v2184 = vpop.xlane.xlu0 %2183
        %2189 = vrot.lane.b32.xlu0 %v1920, 32
        %v2190 = vpop.permute.xlu0 %2189
        %2191 = vrot.lane.b32.xlu0 %v1962, 32
        %v2192 = vpop.permute.xlu0 %2191
        %2193 = vrot.lane.b32.xlu0 %v1922, 32
        %v2194 = vpop.permute.xlu0 %2193
        %2195 = vrot.lane.b32.xlu0 %v1964, 32
        %v2196 = vpop.permute.xlu0 %2195
        %v2197 = vsel %vm2117, %v2190, %v2192
        %v2198 = vsel %vm2117, %v2194, %v2196
        %v2202 = vsel %vm2055, %v2176, 0
        %v2205 = vsel %vm2055, %v2178, 0
        %2207 = vmatpush.msra.mxu0 0.0
        %2208 = vmatpush.msra.mxu0 0.0
        %2209 = vmatpush.msra.mxu0 0.0
        %2210 = vmatpush.msra.mxu0 0.0
        %2211 = vmatpush.msra.mxu0 0.0
        %2212 = vmatpush.msra.mxu0 0.0
        %2213 = vmatpush.msra.mxu0 0.0
        %2214 = vmatpush.msra.mxu0 0.0
        %2215 = vmatpush.msra.mxu0 0.0
        %2216 = vmatpush.msra.mxu0 0.0
        %2217 = vmatpush.msra.mxu0 0.0
        %2218 = vmatpush.msra.mxu0 0.0
        %2219 = vmatpush.msra.mxu0 0.0
        %2220 = vmatpush.msra.mxu0 0.0
        %2221 = vmatpush.msra.mxu0 %v2198
        %2222 = vmatpush.msra.mxu0 %v2197
        %2223 = vmatmul.f32.gmra.mxu0 %v2202
        %v2224 = vpop.f32.mrf.mxu0
        %v2225 = vadd.f32 0.0, %v2224
        %2226 = vmatmul.f32.gmra.mxu0 %v2205
        %v2227 = vpop.f32.mrf.mxu0
        %v2228 = vadd.f32 0.0, %v2227
        %2229 = vdwg.mxu0
        %v2230 = vrcp.pop %v2181
        %v2231 = vrcp.pop %v2184
        %v2232 = vmul.f32 %v2225, %v2230
        %v2233 = vmul.f32 %v2228, %v2231
        %2236 = vrot.lane.b32.xlu0 %v1710, 64
        %v2237 = vpop.permute.xlu0 %2236
        %2238 = vrot.lane.b32.xlu0 %v1752, 64
        %v2239 = vpop.permute.xlu0 %2238
        %2240 = vrot.lane.b32.xlu0 %v1712, 64
        %v2241 = vpop.permute.xlu0 %2240
        %2242 = vrot.lane.b32.xlu0 %v1754, 64
        %v2243 = vpop.permute.xlu0 %2242
        %vm2244 = vcmask 523264
        %v2245 = vsel %vm2244, %v2237, %v2239
        %v2246 = vsel %vm2244, %v2241, %v2243
        %2249 = vrot.lane.b32.xlu0 %v1836, 64
        %v2250 = vpop.permute.xlu0 %2249
        %2251 = vrot.lane.b32.xlu0 %v1878, 64
        %v2252 = vpop.permute.xlu0 %2251
        %2253 = vrot.lane.b32.xlu0 %v1838, 64
        %v2254 = vpop.permute.xlu0 %2253
        %2255 = vrot.lane.b32.xlu0 %v1880, 64
        %v2256 = vpop.permute.xlu0 %2255
        %v2257 = vsel %vm2244, %v2250, %v2252
        %v2258 = vsel %vm2244, %v2254, %v2256
        %v2259 = vsel %vm2015, %v2245, 0
        %v2261 = vsel %vm2015, %v2246, 0
        %v2263 = vsel %vm2015, %v2257, 0
        %v2265 = vsel %vm2015, %v2258, 0
        %2267 = vmatpush.xpose.msra.mxu0 0.0
        %2268 = vmatpush.xpose.msra.mxu0 0.0
        %2269 = vmatpush.xpose.msra.mxu0 0.0
        %2270 = vmatpush.xpose.msra.mxu0 0.0
        %2271 = vmatpush.xpose.msra.mxu0 0.0
        %2272 = vmatpush.xpose.msra.mxu0 0.0
        %2273 = vmatpush.xpose.msra.mxu0 0.0
        %2274 = vmatpush.xpose.msra.mxu0 0.0
        %2275 = vmatpush.xpose.msra.mxu0 0.0
        %2276 = vmatpush.xpose.msra.mxu0 0.0
        %2277 = vmatpush.xpose.msra.mxu0 0.0
        %2278 = vmatpush.xpose.msra.mxu0 0.0
        %2279 = vmatpush.xpose.msra.mxu0 0.0
        %2280 = vmatpush.xpose.msra.mxu0 0.0
        %2281 = vmatpush.xpose.msra.mxu0 %v2265
        %2282 = vmatpush.xpose.msra.mxu0 %v2263
        %2283 = vmatmul.f32.gmra.mxu0 %v2259
        %v2284 = vpop.f32.mrf.mxu0
        %v2285 = vadd.f32 0.0, %v2284
        %2286 = vmatmul.f32.gmra.mxu0 %v2261
        %v2287 = vpop.f32.mrf.mxu0
        %v2288 = vadd.f32 0.0, %v2287
        %2289 = vdwg.mxu0
        %v2290 = vmul.f32 %v2285, 0.10206208
        %v2291 = vmul.f32 %v2288, 0.10206208
        %v2292 = vsel %vm2013, %v2290, -inf
        %v2293 = vsel %vm2014, %v2291, -inf
        %v2294 = vsel %vm2055, %v2292, -inf
        %2295 = vmax.xlane.f32.xlu0 %v2294
        %v2296 = vpop.xlane.xlu0 %2295
        %v2297 = vsel %vm2055, %v2293, -inf
        %2298 = vmax.xlane.f32.xlu0 %v2297
        %v2299 = vpop.xlane.xlu0 %2298
        %v2300 = vsub.f32 %v2292, %v2296
        %v2301 = vsub.f32 %v2293, %v2299
        %v2302 = vmul.f32 %v2300, 1.442695
        %v2303 = vpow.pop %v2302
        %v2304 = vmul.f32 %v2301, 1.442695
        %v2305 = vpow.pop %v2304
        %v2306 = vsel %vm2055, %v2303, 0.0
        %2307 = vadd.xlane.f32.xlu0 %v2306
        %v2308 = vpop.xlane.xlu0 %2307
        %v2309 = vsel %vm2055, %v2305, 0.0
        %2310 = vadd.xlane.f32.xlu0 %v2309
        %v2311 = vpop.xlane.xlu0 %2310
        %2314 = vrot.lane.b32.xlu0 %v1962, 64
        %v2315 = vpop.permute.xlu0 %2314
        %2316 = vrot.lane.b32.xlu0 %v2004, 64
        %v2317 = vpop.permute.xlu0 %2316
        %2318 = vrot.lane.b32.xlu0 %v1964, 64
        %v2319 = vpop.permute.xlu0 %2318
        %2320 = vrot.lane.b32.xlu0 %v2006, 64
        %v2321 = vpop.permute.xlu0 %2320
        %v2322 = vsel %vm2244, %v2315, %v2317
        %v2323 = vsel %vm2244, %v2319, %v2321
        %v2327 = vsel %vm2055, %v2303, 0
        %v2330 = vsel %vm2055, %v2305, 0
        %2332 = vmatpush.msra.mxu0 0.0
        %2333 = vmatpush.msra.mxu0 0.0
        %2334 = vmatpush.msra.mxu0 0.0
        %2335 = vmatpush.msra.mxu0 0.0
        %2336 = vmatpush.msra.mxu0 0.0
        %2337 = vmatpush.msra.mxu0 0.0
        %2338 = vmatpush.msra.mxu0 0.0
        %2339 = vmatpush.msra.mxu0 0.0
        %2340 = vmatpush.msra.mxu0 0.0
        %2341 = vmatpush.msra.mxu0 0.0
        %2342 = vmatpush.msra.mxu0 0.0
        %2343 = vmatpush.msra.mxu0 0.0
        %2344 = vmatpush.msra.mxu0 0.0
        %2345 = vmatpush.msra.mxu0 0.0
        %2346 = vmatpush.msra.mxu0 %v2323
        %2347 = vmatpush.msra.mxu0 %v2322
        %2348 = vmatmul.f32.gmra.mxu0 %v2327
        %v2349 = vpop.f32.mrf.mxu0
        %v2350 = vadd.f32 0.0, %v2349
        %2351 = vmatmul.f32.gmra.mxu0 %v2330
        %v2352 = vpop.f32.mrf.mxu0
        %v2353 = vadd.f32 0.0, %v2352
        %2354 = vdwg.mxu0
        %v2355 = vrcp.pop %v2308
        %v2356 = vrcp.pop %v2311
        %v2357 = vmul.f32 %v2350, %v2355
        %v2358 = vmul.f32 %v2353, %v2356
        %2359 = vrot.lane.b32.xlu0 %v1752, 96
        %v2360 = vpop.permute.xlu0 %2359
        %2361 = vrot.lane.b32.xlu0 %v1754, 96
        %v2362 = vpop.permute.xlu0 %2361
        %2363 = vrot.lane.b32.xlu0 %v1878, 96
        %v2364 = vpop.permute.xlu0 %2363
        %2365 = vrot.lane.b32.xlu0 %v1880, 96
        %v2366 = vpop.permute.xlu0 %2365
        %v2367 = vsel %vm2015, %v2360, 0
        %v2369 = vsel %vm2015, %v2362, 0
        %v2371 = vsel %vm2015, %v2364, 0
        %v2373 = vsel %vm2015, %v2366, 0
        %2375 = vmatpush.xpose.msra.mxu0 0.0
        %2376 = vmatpush.xpose.msra.mxu0 0.0
        %2377 = vmatpush.xpose.msra.mxu0 0.0
        %2378 = vmatpush.xpose.msra.mxu0 0.0
        %2379 = vmatpush.xpose.msra.mxu0 0.0
        %2380 = vmatpush.xpose.msra.mxu0 0.0
        %2381 = vmatpush.xpose.msra.mxu0 0.0
        %2382 = vmatpush.xpose.msra.mxu0 0.0
        %2383 = vmatpush.xpose.msra.mxu0 0.0
        %2384 = vmatpush.xpose.msra.mxu0 0.0
        %2385 = vmatpush.xpose.msra.mxu0 0.0
        %2386 = vmatpush.xpose.msra.mxu0 0.0
        %2387 = vmatpush.xpose.msra.mxu0 0.0
        %2388 = vmatpush.xpose.msra.mxu0 0.0
        %2389 = vmatpush.xpose.msra.mxu0 %v2373
        %2390 = vmatpush.xpose.msra.mxu0 %v2371
        %2391 = vmatmul.f32.gmra.mxu0 %v2367
        %v2392 = vpop.f32.mrf.mxu0
        %v2393 = vadd.f32 0.0, %v2392
        %2394 = vmatmul.f32.gmra.mxu0 %v2369
        %v2395 = vpop.f32.mrf.mxu0
        %v2396 = vadd.f32 0.0, %v2395
        %2397 = vdwg.mxu0
        %v2398 = vmul.f32 %v2393, 0.10206208
        %v2399 = vmul.f32 %v2396, 0.10206208
        %v2400 = vsel %vm2013, %v2398, -inf
        %v2401 = vsel %vm2014, %v2399, -inf
        %v2402 = vsel %vm2055, %v2400, -inf
        %2403 = vmax.xlane.f32.xlu0 %v2402
        %v2404 = vpop.xlane.xlu0 %2403
        %v2405 = vsel %vm2055, %v2401, -inf
        %2406 = vmax.xlane.f32.xlu0 %v2405
        %v2407 = vpop.xlane.xlu0 %2406
        %v2408 = vsub.f32 %v2400, %v2404
        %v2409 = vsub.f32 %v2401, %v2407
        %v2410 = vmul.f32 %v2408, 1.442695
        %v2411 = vpow.pop %v2410
        %v2412 = vmul.f32 %v2409, 1.442695
        %v2413 = vpow.pop %v2412
        %v2414 = vsel %vm2055, %v2411, 0.0
        %2415 = vadd.xlane.f32.xlu0 %v2414
        %v2416 = vpop.xlane.xlu0 %2415
        %v2417 = vsel %vm2055, %v2413, 0.0
        %2418 = vadd.xlane.f32.xlu0 %v2417
        %v2419 = vpop.xlane.xlu0 %2418
        %2420 = vrot.lane.b32.xlu0 %v2004, 96
        %v2421 = vpop.permute.xlu0 %2420
        %2422 = vrot.lane.b32.xlu0 %v2006, 96
        %v2423 = vpop.permute.xlu0 %2422
        %v2427 = vsel %vm2055, %v2411, 0
        %v2430 = vsel %vm2055, %v2413, 0
        %2432 = vmatpush.msra.mxu0 0.0
        %2433 = vmatpush.msra.mxu0 0.0
        %2434 = vmatpush.msra.mxu0 0.0
        %2435 = vmatpush.msra.mxu0 0.0
        %2436 = vmatpush.msra.mxu0 0.0
        %2437 = vmatpush.msra.mxu0 0.0
        %2438 = vmatpush.msra.mxu0 0.0
        %2439 = vmatpush.msra.mxu0 0.0
        %2440 = vmatpush.msra.mxu0 0.0
        %2441 = vmatpush.msra.mxu0 0.0
        %2442 = vmatpush.msra.mxu0 0.0
        %2443 = vmatpush.msra.mxu0 0.0
        %2444 = vmatpush.msra.mxu0 0.0
        %2445 = vmatpush.msra.mxu0 0.0
        %2446 = vmatpush.msra.mxu0 %v2423
        %2447 = vmatpush.msra.mxu0 %v2421
        %2448 = vmatmul.f32.gmra.mxu0 %v2427
        %v2449 = vpop.f32.mrf.mxu0
        %v2450 = vadd.f32 0.0, %v2449
        %2451 = vmatmul.f32.gmra.mxu0 %v2430
        %v2452 = vpop.f32.mrf.mxu0
        %v2453 = vadd.f32 0.0, %v2452
        %2454 = vdwg.mxu0
        %v2455 = vrcp.pop %v2416
        %v2456 = vrcp.pop %v2419
        %v2457 = vmul.f32 %v2450, %v2455
        %v2458 = vmul.f32 %v2453, %v2456
        %2461 = vrot.lane.b32.xlu0 %v2232, 96
        %v2462 = vpop.permute.xlu0 %2461
        %2463 = vrot.lane.b32.xlu0 %v2233, 96
        %v2464 = vpop.permute.xlu0 %2463
        %2469 = vrot.lane.b32.xlu0 %v2357, 64
        %v2470 = vpop.permute.xlu0 %2469
        %2471 = vrot.lane.b32.xlu0 %v2358, 64
        %v2472 = vpop.permute.xlu0 %2471
        %2477 = vrot.lane.b32.xlu0 %v2457, 32
        %v2478 = vpop.permute.xlu0 %2477
        %2479 = vrot.lane.b32.xlu0 %v2458, 32
        %v2480 = vpop.permute.xlu0 %2479
        %v2483 = vsel %vm2015, %v2105, %v2462
        %v2484 = vsel %vm2015, %v2106, %v2464
        %v2485 = vsel %vm2244, %v2462, %v2470
        %v2486 = vsel %vm2244, %v2464, %v2472
        %v2487 = vsel %vm2117, %v2470, %v2478
        %v2488 = vsel %vm2117, %v2472, %v2480
        %v2489 = vpack.c.bf16 %v2484, %v2483
        %v2490 = vpack.c.bf16 %v2486, %v2485
        %v2491 = vpack.c.bf16 %v2488, %v2487
        %v2492 = vld [vmem:[#allocation7] sm:$0xff]
        %v2493 = vld [vmem:[#allocation7 + $0x8] sm:$0xf]
        %v2494 = vld [vmem:[#allocation7 + $0xc] sm:$0xff]
        %v2495 = vld [vmem:[#allocation7 + $0x14] sm:$0xf]
        %v2496 = vld [vmem:[#allocation7 + $0x18] sm:$0xff]
        %v2497 = vld [vmem:[#allocation7 + $0x20] sm:$0xf]
        %v2498 = vld [vmem:[#allocation7 + $0x24] sm:$0xff]
        %v2499 = vld [vmem:[#allocation7 + $0x2c] sm:$0xf]
        %v2500 = vld [vmem:[#allocation7 + $0x30] sm:$0xff]
        %v2501 = vld [vmem:[#allocation7 + $0x38] sm:$0xf]
        %v2502 = vld [vmem:[#allocation7 + $0x3c] sm:$0xff]
        %v2503 = vld [vmem:[#allocation7 + $0x44] sm:$0xf]
        %v2504 = vld [vmem:[#allocation7 + $0x48] sm:$0xff]
        %v2505 = vld [vmem:[#allocation7 + $0x50] sm:$0xf]
        %v2506 = vld [vmem:[#allocation7 + $0x54] sm:$0xff]
        %v2507 = vld [vmem:[#allocation7 + $0x5c] sm:$0xf]
        %v2508 = vld [vmem:[#allocation7 + $0x60] sm:$0xff]
        %v2509 = vld [vmem:[#allocation7 + $0x68] sm:$0xf]
        %v2510 = vld [vmem:[#allocation7 + $0x6c] sm:$0xff]
        %v2511 = vld [vmem:[#allocation7 + $0x74] sm:$0xf]
        %v2512 = vld [vmem:[#allocation7 + $0x78] sm:$0xff]
        %v2513 = vld [vmem:[#allocation7 + $0x80] sm:$0xf]
        %v2514 = vld [vmem:[#allocation7 + $0x84] sm:$0xff]
        %v2515 = vld [vmem:[#allocation7 + $0x8c] sm:$0xf]
        %v2516 = vld [vmem:[#allocation7 + $0x90] sm:$0xff]
        %v2517 = vld [vmem:[#allocation7 + $0x98] sm:$0xf]
        %v2518 = vld [vmem:[#allocation7 + $0x9c] sm:$0xff]
        %v2519 = vld [vmem:[#allocation7 + $0xa4] sm:$0xf]
        %v2520 = vld [vmem:[#allocation7 + $0xa8] sm:$0xff]
        %v2521 = vld [vmem:[#allocation7 + $0xb0] sm:$0xf]
        %v2522 = vld [vmem:[#allocation7 + $0xb4] sm:$0xff]
        %v2523 = vld [vmem:[#allocation7 + $0xbc] sm:$0xf]
        %v2524 = vld [vmem:[#allocation7 + $0xc0] sm:$0xff]
        %v2525 = vld [vmem:[#allocation7 + $0xc8] sm:$0xf]
        %v2526 = vld [vmem:[#allocation7 + $0xcc] sm:$0xff]
        %v2527 = vld [vmem:[#allocation7 + $0xd4] sm:$0xf]
        %v2528 = vld [vmem:[#allocation7 + $0xd8] sm:$0xff]
        %v2529 = vld [vmem:[#allocation7 + $0xe0] sm:$0xf]
        %v2530 = vld [vmem:[#allocation7 + $0xe4] sm:$0xff]
        %v2531 = vld [vmem:[#allocation7 + $0xec] sm:$0xf]
        %v2532 = vld [vmem:[#allocation7 + $0xf0] sm:$0xff]
        %v2533 = vld [vmem:[#allocation7 + $0xf8] sm:$0xf]
        %v2534 = vld [vmem:[#allocation7 + $0xfc] sm:$0xff]
        %v2535 = vld [vmem:[#allocation7 + $0x104] sm:$0xf]
        %v2536 = vld [vmem:[#allocation7 + $0x108] sm:$0xff]
        %v2537 = vld [vmem:[#allocation7 + $0x110] sm:$0xf]
        %v2538 = vld [vmem:[#allocation7 + $0x114] sm:$0xff]
        %v2539 = vld [vmem:[#allocation7 + $0x11c] sm:$0xf]
        %v2540 = vld [vmem:[#allocation7 + $0x120] sm:$0xff]
        %v2541 = vld [vmem:[#allocation7 + $0x128] sm:$0xf]
        %v2542 = vld [vmem:[#allocation7 + $0x12c] sm:$0xff]
        %v2543 = vld [vmem:[#allocation7 + $0x134] sm:$0xf]
        %v2544 = vld [vmem:[#allocation7 + $0x138] sm:$0xff]
        %v2545 = vld [vmem:[#allocation7 + $0x140] sm:$0xf]
        %v2546 = vld [vmem:[#allocation7 + $0x144] sm:$0xff]
        %v2547 = vld [vmem:[#allocation7 + $0x14c] sm:$0xf]
        %v2548 = vld [vmem:[#allocation7 + $0x150] sm:$0xff]
        %v2549 = vld [vmem:[#allocation7 + $0x158] sm:$0xf]
        %v2550 = vld [vmem:[#allocation7 + $0x15c] sm:$0xff]
        %v2551 = vld [vmem:[#allocation7 + $0x164] sm:$0xf]
        %v2552 = vld [vmem:[#allocation7 + $0x168] sm:$0xff]
        %v2553 = vld [vmem:[#allocation7 + $0x170] sm:$0xf]
        %v2554 = vld [vmem:[#allocation7 + $0x174] sm:$0xff]
        %v2555 = vld [vmem:[#allocation7 + $0x17c] sm:$0xf]
        %v2556 = vld [vmem:[#allocation7 + $0x180] sm:$0xff]
        %v2557 = vld [vmem:[#allocation7 + $0x188] sm:$0xf]
        %v2558 = vld [vmem:[#allocation7 + $0x18c] sm:$0xff]
        %v2559 = vld [vmem:[#allocation7 + $0x194] sm:$0xf]
        %v2560 = vld [vmem:[#allocation7 + $0x198] sm:$0xff]
        %v2561 = vld [vmem:[#allocation7 + $0x1a0] sm:$0xf]
        %v2562 = vld [vmem:[#allocation7 + $0x1a4] sm:$0xff]
        %v2563 = vld [vmem:[#allocation7 + $0x1ac] sm:$0xf]
        %v2564 = vld [vmem:[#allocation7 + $0x1b0] sm:$0xff]
        %v2565 = vld [vmem:[#allocation7 + $0x1b8] sm:$0xf]
        %v2566 = vld [vmem:[#allocation7 + $0x1bc] sm:$0xff]
        %v2567 = vld [vmem:[#allocation7 + $0x1c4] sm:$0xf]
        %v2568 = vld [vmem:[#allocation7 + $0x1c8] sm:$0xff]
        %v2569 = vld [vmem:[#allocation7 + $0x1d0] sm:$0xf]
        %v2570 = vld [vmem:[#allocation7 + $0x1d4] sm:$0xff]
        %v2571 = vld [vmem:[#allocation7 + $0x1dc] sm:$0xf]
        %v2572 = vld [vmem:[#allocation7 + $0x1e0] sm:$0xff]
        %v2573 = vld [vmem:[#allocation7 + $0x1e8] sm:$0xf]
        %v2574 = vld [vmem:[#allocation7 + $0x1ec] sm:$0xff]
        %v2575 = vld [vmem:[#allocation7 + $0x1f4] sm:$0xf]
        %v2576 = vld [vmem:[#allocation7 + $0x1f8] sm:$0xff]
        %v2577 = vld [vmem:[#allocation7 + $0x200] sm:$0xf]
        %v2578 = vld [vmem:[#allocation7 + $0x204] sm:$0xff]
        %v2579 = vld [vmem:[#allocation7 + $0x20c] sm:$0xf]
        %v2580 = vld [vmem:[#allocation7 + $0x210] sm:$0xff]
        %v2581 = vld [vmem:[#allocation7 + $0x218] sm:$0xf]
        %v2582 = vld [vmem:[#allocation7 + $0x21c] sm:$0xff]
        %v2583 = vld [vmem:[#allocation7 + $0x224] sm:$0xf]
        %v2584 = vld [vmem:[#allocation7 + $0x228] sm:$0xff]
        %v2585 = vld [vmem:[#allocation7 + $0x230] sm:$0xf]
        %v2586 = vld [vmem:[#allocation7 + $0x234] sm:$0xff]
        %v2587 = vld [vmem:[#allocation7 + $0x23c] sm:$0xf]
        %v2588 = vld [vmem:[#allocation8] sm:$0x7]
        %v2590 = vperm.slane %v2588, 0
        %v2591 = vperm.slane %v2588, 1
        %v2592 = vperm.slane %v2588, 2
        %v2692 = vunpack.c.l.b16 %v2492
        %v2693 = vunpack.c.h.b16 %v2492
        %v2694 = vunpack.c.l.b16 %v2493
        %v2695 = vunpack.c.l.b16 %v2494
        %v2696 = vunpack.c.h.b16 %v2494
        %v2697 = vunpack.c.l.b16 %v2495
        %v2698 = vunpack.c.l.b16 %v2496
        %v2699 = vunpack.c.h.b16 %v2496
        %v2700 = vunpack.c.l.b16 %v2497
        %v2701 = vunpack.c.l.b16 %v2498
        %v2702 = vunpack.c.h.b16 %v2498
        %v2703 = vunpack.c.l.b16 %v2499
        %v2704 = vunpack.c.l.b16 %v2500
        %v2705 = vunpack.c.h.b16 %v2500
        %v2706 = vunpack.c.l.b16 %v2501
        %v2707 = vunpack.c.l.b16 %v2502
        %v2708 = vunpack.c.h.b16 %v2502
        %v2709 = vunpack.c.l.b16 %v2503
        %v2710 = vunpack.c.l.b16 %v2504
        %v2711 = vunpack.c.h.b16 %v2504
        %v2712 = vunpack.c.l.b16 %v2505
        %v2713 = vunpack.c.l.b16 %v2506
        %v2714 = vunpack.c.h.b16 %v2506
        %v2715 = vunpack.c.l.b16 %v2507
        %v2716 = vunpack.c.l.b16 %v2508
        %v2717 = vunpack.c.h.b16 %v2508
        %v2718 = vunpack.c.l.b16 %v2509
        %v2719 = vunpack.c.l.b16 %v2510
        %v2720 = vunpack.c.h.b16 %v2510
        %v2721 = vunpack.c.l.b16 %v2511
        %v2722 = vunpack.c.l.b16 %v2512
        %v2723 = vunpack.c.h.b16 %v2512
        %v2724 = vunpack.c.l.b16 %v2513
        %v2725 = vunpack.c.l.b16 %v2514
        %v2726 = vunpack.c.h.b16 %v2514
        %v2727 = vunpack.c.l.b16 %v2515
        %v2728 = vunpack.c.l.b16 %v2516
        %v2729 = vunpack.c.h.b16 %v2516
        %v2730 = vunpack.c.l.b16 %v2517
        %v2731 = vunpack.c.l.b16 %v2518
        %v2732 = vunpack.c.h.b16 %v2518
        %v2733 = vunpack.c.l.b16 %v2519
        %v2734 = vunpack.c.l.b16 %v2520
        %v2735 = vunpack.c.h.b16 %v2520
        %v2736 = vunpack.c.l.b16 %v2521
        %v2737 = vunpack.c.l.b16 %v2522
        %v2738 = vunpack.c.h.b16 %v2522
        %v2739 = vunpack.c.l.b16 %v2523
        %v2740 = vunpack.c.l.b16 %v2524
        %v2741 = vunpack.c.h.b16 %v2524
        %v2742 = vunpack.c.l.b16 %v2525
        %v2743 = vunpack.c.l.b16 %v2526
        %v2744 = vunpack.c.h.b16 %v2526
        %v2745 = vunpack.c.l.b16 %v2527
        %v2746 = vunpack.c.l.b16 %v2528
        %v2747 = vunpack.c.h.b16 %v2528
        %v2748 = vunpack.c.l.b16 %v2529
        %v2749 = vunpack.c.l.b16 %v2530
        %v2750 = vunpack.c.h.b16 %v2530
        %v2751 = vunpack.c.l.b16 %v2531
        %v2752 = vunpack.c.l.b16 %v2532
        %v2753 = vunpack.c.h.b16 %v2532
        %v2754 = vunpack.c.l.b16 %v2533
        %v2755 = vunpack.c.l.b16 %v2534
        %v2756 = vunpack.c.h.b16 %v2534
        %v2757 = vunpack.c.l.b16 %v2535
        %v2758 = vunpack.c.l.b16 %v2536
        %v2759 = vunpack.c.h.b16 %v2536
        %v2760 = vunpack.c.l.b16 %v2537
        %v2761 = vunpack.c.l.b16 %v2538
        %v2762 = vunpack.c.h.b16 %v2538
        %v2763 = vunpack.c.l.b16 %v2539
        %v2764 = vunpack.c.l.b16 %v2540
        %v2765 = vunpack.c.h.b16 %v2540
        %v2766 = vunpack.c.l.b16 %v2541
        %v2767 = vunpack.c.l.b16 %v2542
        %v2768 = vunpack.c.h.b16 %v2542
        %v2769 = vunpack.c.l.b16 %v2543
        %v2770 = vunpack.c.l.b16 %v2544
        %v2771 = vunpack.c.h.b16 %v2544
        %v2772 = vunpack.c.l.b16 %v2545
        %v2773 = vunpack.c.l.b16 %v2546
        %v2774 = vunpack.c.h.b16 %v2546
        %v2775 = vunpack.c.l.b16 %v2547
        %v2776 = vunpack.c.l.b16 %v2548
        %v2777 = vunpack.c.h.b16 %v2548
        %v2778 = vunpack.c.l.b16 %v2549
        %v2779 = vunpack.c.l.b16 %v2550
        %v2780 = vunpack.c.h.b16 %v2550
        %v2781 = vunpack.c.l.b16 %v2551
        %v2782 = vunpack.c.l.b16 %v2552
        %v2783 = vunpack.c.h.b16 %v2552
        %v2784 = vunpack.c.l.b16 %v2553
        %v2785 = vunpack.c.l.b16 %v2554
        %v2786 = vunpack.c.h.b16 %v2554
        %v2787 = vunpack.c.l.b16 %v2555
        %v2788 = vunpack.c.l.b16 %v2556
        %v2789 = vunpack.c.h.b16 %v2556
        %v2790 = vunpack.c.l.b16 %v2557
        %v2791 = vunpack.c.l.b16 %v2558
        %v2792 = vunpack.c.h.b16 %v2558
        %v2793 = vunpack.c.l.b16 %v2559
        %v2794 = vunpack.c.l.b16 %v2560
        %v2795 = vunpack.c.h.b16 %v2560
        %v2796 = vunpack.c.l.b16 %v2561
        %v2797 = vunpack.c.l.b16 %v2562
        %v2798 = vunpack.c.h.b16 %v2562
        %v2799 = vunpack.c.l.b16 %v2563
        %v2800 = vunpack.c.l.b16 %v2564
        %v2801 = vunpack.c.h.b16 %v2564
        %v2802 = vunpack.c.l.b16 %v2565
        %v2803 = vunpack.c.l.b16 %v2566
        %v2804 = vunpack.c.h.b16 %v2566
        %v2805 = vunpack.c.l.b16 %v2567
        %v2806 = vunpack.c.l.b16 %v2568
        %v2807 = vunpack.c.h.b16 %v2568
        %v2808 = vunpack.c.l.b16 %v2569
        %v2809 = vunpack.c.l.b16 %v2570
        %v2810 = vunpack.c.h.b16 %v2570
        %v2811 = vunpack.c.l.b16 %v2571
        %v2812 = vunpack.c.l.b16 %v2572
        %v2813 = vunpack.c.h.b16 %v2572
        %v2814 = vunpack.c.l.b16 %v2573
        %v2815 = vunpack.c.l.b16 %v2574
        %v2816 = vunpack.c.h.b16 %v2574
        %v2817 = vunpack.c.l.b16 %v2575
        %v2818 = vunpack.c.l.b16 %v2576
        %v2819 = vunpack.c.h.b16 %v2576
        %v2820 = vunpack.c.l.b16 %v2577
        %v2821 = vunpack.c.l.b16 %v2578
        %v2822 = vunpack.c.h.b16 %v2578
        %v2823 = vunpack.c.l.b16 %v2579
        %v2824 = vunpack.c.l.b16 %v2580
        %v2825 = vunpack.c.h.b16 %v2580
        %v2826 = vunpack.c.l.b16 %v2581
        %v2827 = vunpack.c.l.b16 %v2582
        %v2828 = vunpack.c.h.b16 %v2582
        %v2829 = vunpack.c.l.b16 %v2583
        %v2830 = vunpack.c.l.b16 %v2584
        %v2831 = vunpack.c.h.b16 %v2584
        %v2832 = vunpack.c.l.b16 %v2585
        %v2833 = vunpack.c.l.b16 %v2586
        %v2834 = vunpack.c.h.b16 %v2586
        %v2835 = vunpack.c.l.b16 %v2587
        %v2836 = vpack.c.b16 %v2695, %v2692
        %v2837 = vpack.c.b16 %v2696, %v2693
        %v2838 = vpack.c.b16 %v2697, %v2694
        %v2839 = vpack.c.b16 %v2701, %v2698
        %v2840 = vpack.c.b16 %v2702, %v2699
        %v2841 = vpack.c.b16 %v2703, %v2700
        %v2842 = vpack.c.b16 %v2707, %v2704
        %v2843 = vpack.c.b16 %v2708, %v2705
        %v2844 = vpack.c.b16 %v2709, %v2706
        %v2845 = vpack.c.b16 %v2713, %v2710
        %v2846 = vpack.c.b16 %v2714, %v2711
        %v2847 = vpack.c.b16 %v2715, %v2712
        %v2848 = vpack.c.b16 %v2719, %v2716
        %v2849 = vpack.c.b16 %v2720, %v2717
        %v2850 = vpack.c.b16 %v2721, %v2718
        %v2851 = vpack.c.b16 %v2725, %v2722
        %v2852 = vpack.c.b16 %v2726, %v2723
        %v2853 = vpack.c.b16 %v2727, %v2724
        %v2854 = vpack.c.b16 %v2731, %v2728
        %v2855 = vpack.c.b16 %v2732, %v2729
        %v2856 = vpack.c.b16 %v2733, %v2730
        %v2857 = vpack.c.b16 %v2737, %v2734
        %v2858 = vpack.c.b16 %v2738, %v2735
        %v2859 = vpack.c.b16 %v2739, %v2736
        %v2860 = vpack.c.b16 %v2743, %v2740
        %v2861 = vpack.c.b16 %v2744, %v2741
        %v2862 = vpack.c.b16 %v2745, %v2742
        %v2863 = vpack.c.b16 %v2749, %v2746
        %v2864 = vpack.c.b16 %v2750, %v2747
        %v2865 = vpack.c.b16 %v2751, %v2748
        %v2866 = vpack.c.b16 %v2755, %v2752
        %v2867 = vpack.c.b16 %v2756, %v2753
        %v2868 = vpack.c.b16 %v2757, %v2754
        %v2869 = vpack.c.b16 %v2761, %v2758
        %v2870 = vpack.c.b16 %v2762, %v2759
        %v2871 = vpack.c.b16 %v2763, %v2760
        %v2872 = vpack.c.b16 %v2767, %v2764
        %v2873 = vpack.c.b16 %v2768, %v2765
        %v2874 = vpack.c.b16 %v2769, %v2766
        %v2875 = vpack.c.b16 %v2773, %v2770
        %v2876 = vpack.c.b16 %v2774, %v2771
        %v2877 = vpack.c.b16 %v2775, %v2772
        %v2878 = vpack.c.b16 %v2779, %v2776
        %v2879 = vpack.c.b16 %v2780, %v2777
        %v2880 = vpack.c.b16 %v2781, %v2778
        %v2881 = vpack.c.b16 %v2785, %v2782
        %v2882 = vpack.c.b16 %v2786, %v2783
        %v2883 = vpack.c.b16 %v2787, %v2784
        %v2884 = vpack.c.b16 %v2791, %v2788
        %v2885 = vpack.c.b16 %v2792, %v2789
        %v2886 = vpack.c.b16 %v2793, %v2790
        %v2887 = vpack.c.b16 %v2797, %v2794
        %v2888 = vpack.c.b16 %v2798, %v2795
        %v2889 = vpack.c.b16 %v2799, %v2796
        %v2890 = vpack.c.b16 %v2803, %v2800
        %v2891 = vpack.c.b16 %v2804, %v2801
        %v2892 = vpack.c.b16 %v2805, %v2802
        %v2893 = vpack.c.b16 %v2809, %v2806
        %v2894 = vpack.c.b16 %v2810, %v2807
        %v2895 = vpack.c.b16 %v2811, %v2808
        %v2896 = vpack.c.b16 %v2815, %v2812
        %v2897 = vpack.c.b16 %v2816, %v2813
        %v2898 = vpack.c.b16 %v2817, %v2814
        %v2899 = vpack.c.b16 %v2821, %v2818
        %v2900 = vpack.c.b16 %v2822, %v2819
        %v2901 = vpack.c.b16 %v2823, %v2820
        %v2902 = vpack.c.b16 %v2827, %v2824
        %v2903 = vpack.c.b16 %v2828, %v2825
        %v2904 = vpack.c.b16 %v2829, %v2826
        %v2905 = vpack.c.b16 %v2833, %v2830
        %v2906 = vpack.c.b16 %v2834, %v2831
        %v2907 = vpack.c.b16 %v2835, %v2832
        %2980 = vmatpush.bf16.msra.mxu0 %v2857
        %2981 = vmatpush.bf16.msra.mxu0 %v2854
        %2982 = vmatpush.bf16.msra.mxu0 %v2851
        %2983 = vmatpush.bf16.msra.mxu0 %v2848
        %2984 = vmatpush.bf16.msra.mxu0 %v2845
        %2985 = vmatpush.bf16.msra.mxu0 %v2842
        %2986 = vmatpush.bf16.msra.mxu0 %v2839
        %2987 = vmatpush.bf16.msra.mxu0 %v2836
        %2988 = vmatmul.bf16.gmra.mxu0 %v2489
        %v2989 = vpop.f32.mrf.mxu0
        %v2990 = vadd.f32 %v2590, %v2989
        %v2991 = vpop.f32.mrf.mxu0
        %v2992 = vadd.f32 %v2590, %v2991
        %2993 = vdwg.mxu0
        %2994 = vmatpush.bf16.msra.mxu0 %v2881
        %2995 = vmatpush.bf16.msra.mxu0 %v2878
        %2996 = vmatpush.bf16.msra.mxu0 %v2875
        %2997 = vmatpush.bf16.msra.mxu0 %v2872
        %2998 = vmatpush.bf16.msra.mxu0 %v2869
        %2999 = vmatpush.bf16.msra.mxu0 %v2866
        %3000 = vmatpush.bf16.msra.mxu0 %v2863
        %3001 = vmatpush.bf16.msra.mxu0 %v2860
        %3002 = vmatmul.bf16.gmra.mxu0 %v2490
        %v3003 = vpop.f32.mrf.mxu0
        %v3004 = vadd.f32 %v2990, %v3003
        %v3005 = vpop.f32.mrf.mxu0
        %v3006 = vadd.f32 %v2992, %v3005
        %3007 = vdwg.mxu0
        %3008 = vmatpush.bf16.msra.mxu0 %v2905
        %3009 = vmatpush.bf16.msra.mxu0 %v2902
        %3010 = vmatpush.bf16.msra.mxu0 %v2899
        %3011 = vmatpush.bf16.msra.mxu0 %v2896
        %3012 = vmatpush.bf16.msra.mxu0 %v2893
        %3013 = vmatpush.bf16.msra.mxu0 %v2890
        %3014 = vmatpush.bf16.msra.mxu0 %v2887
        %3015 = vmatpush.bf16.msra.mxu0 %v2884
        %3016 = vmatmul.bf16.gmra.mxu0 %v2491
        %v3017 = vpop.f32.mrf.mxu0
        %v3018 = vadd.f32 %v3004, %v3017
        %v3019 = vpop.f32.mrf.mxu0
        %v3020 = vadd.f32 %v3006, %v3019
        %3021 = vdwg.mxu0
        %3022 = vmatpush.bf16.msra.mxu0 %v2858
        %3023 = vmatpush.bf16.msra.mxu0 %v2855
        %3024 = vmatpush.bf16.msra.mxu0 %v2852
        %3025 = vmatpush.bf16.msra.mxu0 %v2849
        %3026 = vmatpush.bf16.msra.mxu0 %v2846
        %3027 = vmatpush.bf16.msra.mxu0 %v2843
        %3028 = vmatpush.bf16.msra.mxu0 %v2840
        %3029 = vmatpush.bf16.msra.mxu0 %v2837
        %3030 = vmatmul.bf16.gmra.mxu0 %v2489
        %v3031 = vpop.f32.mrf.mxu0
        %v3032 = vadd.f32 %v2591, %v3031
        %v3033 = vpop.f32.mrf.mxu0
        %v3034 = vadd.f32 %v2591, %v3033
        %3035 = vdwg.mxu0
        %3036 = vmatpush.bf16.msra.mxu0 %v2882
        %3037 = vmatpush.bf16.msra.mxu0 %v2879
        %3038 = vmatpush.bf16.msra.mxu0 %v2876
        %3039 = vmatpush.bf16.msra.mxu0 %v2873
        %3040 = vmatpush.bf16.msra.mxu0 %v2870
        %3041 = vmatpush.bf16.msra.mxu0 %v2867
        %3042 = vmatpush.bf16.msra.mxu0 %v2864
        %3043 = vmatpush.bf16.msra.mxu0 %v2861
        %3044 = vmatmul.bf16.gmra.mxu0 %v2490
        %v3045 = vpop.f32.mrf.mxu0
        %v3046 = vadd.f32 %v3032, %v3045
        %v3047 = vpop.f32.mrf.mxu0
        %v3048 = vadd.f32 %v3034, %v3047
        %3049 = vdwg.mxu0
        %3050 = vmatpush.bf16.msra.mxu0 %v2906
        %3051 = vmatpush.bf16.msra.mxu0 %v2903
        %3052 = vmatpush.bf16.msra.mxu0 %v2900
        %3053 = vmatpush.bf16.msra.mxu0 %v2897
        %3054 = vmatpush.bf16.msra.mxu0 %v2894
        %3055 = vmatpush.bf16.msra.mxu0 %v2891
        %3056 = vmatpush.bf16.msra.mxu0 %v2888
        %3057 = vmatpush.bf16.msra.mxu0 %v2885
        %3058 = vmatmul.bf16.gmra.mxu0 %v2491
        %v3059 = vpop.f32.mrf.mxu0
        %v3060 = vadd.f32 %v3046, %v3059
        %v3061 = vpop.f32.mrf.mxu0
        %v3062 = vadd.f32 %v3048, %v3061
        %3063 = vdwg.mxu0
        %3064 = vmatpush.bf16.msra.mxu0 %v2859
        %3065 = vmatpush.bf16.msra.mxu0 %v2856
        %3066 = vmatpush.bf16.msra.mxu0 %v2853
        %3067 = vmatpush.bf16.msra.mxu0 %v2850
        %3068 = vmatpush.bf16.msra.mxu0 %v2847
        %3069 = vmatpush.bf16.msra.mxu0 %v2844
        %3070 = vmatpush.bf16.msra.mxu0 %v2841
        %3071 = vmatpush.bf16.msra.mxu0 %v2838
        %3072 = vmatmul.bf16.gmra.mxu0 %v2489
        %v3073 = vpop.f32.mrf.mxu0
        %v3074 = vadd.f32 %v2592, %v3073
        %v3075 = vpop.f32.mrf.mxu0
        %v3076 = vadd.f32 %v2592, %v3075
        %3077 = vdwg.mxu0
        %3078 = vmatpush.bf16.msra.mxu0 %v2883
        %3079 = vmatpush.bf16.msra.mxu0 %v2880
        %3080 = vmatpush.bf16.msra.mxu0 %v2877
        %3081 = vmatpush.bf16.msra.mxu0 %v2874
        %3082 = vmatpush.bf16.msra.mxu0 %v2871
        %3083 = vmatpush.bf16.msra.mxu0 %v2868
        %3084 = vmatpush.bf16.msra.mxu0 %v2865
        %3085 = vmatpush.bf16.msra.mxu0 %v2862
        %3086 = vmatmul.bf16.gmra.mxu0 %v2490
        %v3087 = vpop.f32.mrf.mxu0
        %v3088 = vadd.f32 %v3074, %v3087
        %v3089 = vpop.f32.mrf.mxu0
        %v3090 = vadd.f32 %v3076, %v3089
        %3091 = vdwg.mxu0
        %3092 = vmatpush.bf16.msra.mxu0 %v2907
        %3093 = vmatpush.bf16.msra.mxu0 %v2904
        %3094 = vmatpush.bf16.msra.mxu0 %v2901
        %3095 = vmatpush.bf16.msra.mxu0 %v2898
        %3096 = vmatpush.bf16.msra.mxu0 %v2895
        %3097 = vmatpush.bf16.msra.mxu0 %v2892
        %3098 = vmatpush.bf16.msra.mxu0 %v2889
        %3099 = vmatpush.bf16.msra.mxu0 %v2886
        %3100 = vmatmul.bf16.gmra.mxu0 %v2491
        %v3101 = vpop.f32.mrf.mxu0
        %v3102 = vadd.f32 %v3088, %v3101
        %v3103 = vpop.f32.mrf.mxu0
        %v3104 = vadd.f32 %v3090, %v3103
        %3105 = vdwg.mxu0
        %3106 = vst [vmem:[%s265] sm:$0xff] %v3018
        %3107 = vst [vmem:[%s265 + $0x8] sm:$0xff] %v3060
        %3108 = vst [vmem:[%s265 + $0x10] sm:$0xff] %v3102
        %3109 = vst [vmem:[%s265 + $0x18] sm:$0xff] %v3020
        %3110 = vst [vmem:[%s265 + $0x20] sm:$0xff] %v3062
        %3111 = vst [vmem:[%s265 + $0x28] sm:$0xff] %v3104
        %s3112 = sand.u32 %s120, 1
        %s3113 = scalar_lea.sflag [#allocation4], %s3112
        %s3114 = sand.u32 %s120, 1
        %s3115 = smul.addr %s3114, 48
        %s3116 = scalar_lea.vmem [#allocation10], %s3115
        // Predicated region
        $region53: #{tpu_custom_call.1} parent=35 // pred_check
          %p3117 = pneg %p130
        $region54: #{tpu_custom_call.1} parent=35 // pred_check_branch
          %3119 = sbr.rel (%p3117) target = $region56
        $region55: #{tpu_custom_call.1} parent=35 // pred_region
          %3121 = vsyncadd %s3113, 0
          %s3122 = smul.addr %s23, 6
          %s3123 = smul.addr %s3122, 8
          %s3124 = scalar_lea.hbm %s4, %s3123
          %s3125 = sshll.u32 %s3116, 4
          %s3126 = int_to_ptr.vmem [resolvable:$true] %s3125
          %s3127 = sshll.u32 %s3124, 4
          %s3128 = int_to_ptr.hbm [resolvable:$true] %s3127
          %3133 = dma.vmem_to_hbm [thread:$0]  %s3126, 768, %s3128, %s3113, 384, 384, 24
        $region56: #{tpu_custom_call.1} parent=35 // pred_fallthru
          _
      $region36: #{tpu_custom_call.1} parent=5 // pred_fallthru
        _
      %p3134 = scmp.le.s32.totalorder 2, %s18
      // Predicated region
      $region57: #{tpu_custom_call.1} parent=5 // pred_check
        %p3135 = pneg %p3134
      $region58: #{tpu_custom_call.1} parent=5 // pred_check_branch
        %3137 = sbr.rel (%p3135) target = $region60
      $region59: #{tpu_custom_call.1} parent=5 // pred_region
        %s3138 = ssub.s32 %s18, 2
        // Predicated region
        $region61: #{tpu_custom_call.1} parent=59 // pred_check
          %p3139 = pneg %p136
        $region62: #{tpu_custom_call.1} parent=59 // pred_check_branch
          %3141 = sbr.rel (%p3139) target = $region64
        $region63: #{tpu_custom_call.1} parent=59 // pred_region
          %s3142 = sand.u32 %s121, 1
          %s3143 = scalar_lea.sflag [#allocation4], %s3142
          %s3144 = sand.u32 %s121, 1
          %s3145 = smul.addr %s3144, 48
          %s3146 = scalar_lea.vmem [#allocation10], %s3145
          %3148 = dma.done %s3143, 768
        $region64: #{tpu_custom_call.1} parent=59 // pred_fallthru
          _
      $region60: #{tpu_custom_call.1} parent=5 // pred_fallthru
        _
    $region6: #{tpu_custom_call.1} parent=1 // loop_footer
      %s22 = sadd.s32 1, %s18
    $region7: #{tpu_custom_call.1} parent=1 // loop_footer_branch
      %17 = sbr.rel target = $region3
    $region8: #{tpu_custom_call.1} parent=1 // loop_exit
      _
    %3149 = vsyncpa [#allocation3], 1
    %s3150 = scalar_lea.sflag [#allocation3], 1
    %3151 = vsyncpa %s3150, 1
    %3152 = vsyncpa [#allocation6], 1
    %3153 = vsyncpa [#allocation9], 1
    %3154 = vsyncpa [#allocation4], 1
    %s3155 = scalar_lea.sflag [#allocation4], 1
    %3156 = vsyncpa %s3155, 1

</llo_original>
